<compile_context>
chip_gen: v7x
topology: tpu7x:2x2x1
jax: 0.10.0
libtpu: 0.0.40
codegen_flags: <defaults>
</compile_context>

<pallas_src>
import jax
import jax.numpy as jnp
from jax.experimental import pallas as pl
from jax.experimental.pallas import tpu as pltpu

# ---- model config (small, consistent with the crowd_nav module) ----
INPUT_DIM = 13
SELF_STATE_DIM = 6
MLP1_DIMS = (64, 32)
RNN_HIDDEN_DIM = 32
MLP_DIMS = (64, 32, 1)   # mlp(self_state_dim + rnn_hidden_dim, mlp_dims)

PARAM_LANES = 128        # lane-dense parameter slab width


def _round8(r):
    return -(-r // 8) * 8


def _round_up(x, m):
    return -(-x // m) * m


def _build_param_layout():
    """Static (row_offset, rows, cols) layout of every (folded, TRANSPOSED)
    parameter inside a single (PARAM_ROWS, 128) f32 slab. Weights are stored as
    (F_out, F_in) and biases as (F_out, 1) columns; every offset is 8-row
    aligned so in-kernel slices are sublane-aligned."""
    H = RNN_HIDDEN_DIM
    shapes = [
        ("w1T",     (MLP1_DIMS[0], INPUT_DIM)),       # (64, 13)
        ("b1",      (MLP1_DIMS[0], 1)),               # (64, 1)
        ("w_foldT", (H, MLP1_DIMS[0])),               # (32, 64) = (w2@wih)^T
        ("b_fold",  (H, 1)),                          # (32, 1)  = (b2@wih+bih+bhh)^T
        ("whhT",    (H, H)),                          # (32, 32)
        ("w3sT",    (MLP_DIMS[0], SELF_STATE_DIM)),   # (64, 6)
        ("w3hT",    (MLP_DIMS[0], H)),                # (64, 32)
        ("b3",      (MLP_DIMS[0], 1)),                # (64, 1)
        ("w4T",     (MLP_DIMS[1], MLP_DIMS[0])),      # (32, 64)
        ("b4",      (MLP_DIMS[1], 1)),                # (32, 1)
        ("w5T",     (MLP_DIMS[2], MLP_DIMS[1])),      # (1, 32)
        ("b5",      (MLP_DIMS[2], 1)),                # (1, 1)
    ]
    layout, off = {}, 0
    for name, (r, c) in shapes:
        layout[name] = (off, r, c)
        off += _round8(r)
    return layout, off


PARAM_LAYOUT, PARAM_ROWS = _build_param_layout()


def value_network2_kernel(state_ref, p_ref, out_ref, pre_ref):
    """One batch tile, feature-major (batch in the 128-lane axis).
    state_ref: (1, D, N*BT)   per-tile state, rows = features, lanes = (t, b)
    p_ref    : (PARAM_ROWS, 128) packed parameter slab (VMEM-resident)
    out_ref  : (1, 1, BT)     lane-dense output row
    pre_ref  : (H, N*BT)      VMEM scratch: per-timestep RNN input pre-activations
    """
    BT = out_ref.shape[-1]
    NBT = state_ref.shape[-1]
    N = NBT // BT

    def param(name):
        off, r, c = PARAM_LAYOUT[name]
        return p_ref[off:off + r, 0:c]          # static, sublane-aligned slice

    # ---- mlp1 layer 1 + folded (mlp1 layer 2 @ RNN input proj), all timesteps at once ----
    x = state_ref[0]                                              # (D, N*BT)
    h = jnp.maximum(
        jnp.dot(param("w1T"), x, preferred_element_type=jnp.float32) + param("b1"), 0.0)
    pre_ref[...] = (jnp.dot(param("w_foldT"), h, preferred_element_type=jnp.float32)
                    + param("b_fold"))                            # (H, N*BT)

    # ---- vanilla RNN (tanh), h0 = 0: only whh^T @ hid + tanh on the serial path ----
    whhT = param("whhT")
    hid = jnp.zeros((RNN_HIDDEN_DIM, BT), jnp.float32)            # 4 vregs per 128 lanes
    for t in range(N):                                            # static, small trip count
        hid = jnp.tanh(pre_ref[:, t * BT:(t + 1) * BT]            # static 128-aligned slice
                       + jnp.dot(whhT, hid, preferred_element_type=jnp.float32))

    # ---- joint = cat([self_state, hn]); mlp: Lin+ReLU, Lin+ReLU, Lin ----
    # self_state = state[:, 0, :6]  ==  first BT lanes / first 6 rows of the resident tile.
    self_fm = x[:SELF_STATE_DIM, :BT]                             # (6, BT)
    z = jnp.maximum(
        jnp.dot(param("w3sT"), self_fm, preferred_element_type=jnp.float32)
        + jnp.dot(param("w3hT"), hid, preferred_element_type=jnp.float32)
        + param("b3"), 0.0)
    z = jnp.maximum(
        jnp.dot(param("w4T"), z, preferred_element_type=jnp.float32) + param("b4"), 0.0)
    out_ref[0] = jnp.dot(param("w5T"), z, preferred_element_type=jnp.float32) + param("b5")


def init_params(key):
    """Deterministic PyTorch-default-style init: U(-1/sqrt(fan_in), +1/sqrt(fan_in)).
    Returns the RAW (unfolded, untransposed) 15-tuple; folding/packing in pack_params."""
    keys = iter(jax.random.split(key, 32))

    def lin(in_dim, out_dim):
        bound = 1.0 / jnp.sqrt(jnp.float32(in_dim))
        w = jax.random.uniform(next(keys), (in_dim, out_dim), jnp.float32, -bound, bound)
        b = jax.random.uniform(next(keys), (1, out_dim), jnp.float32, -bound, bound)
        return w, b

    # mlp1: Linear(D, 64) + ReLU + Linear(64, 32)
    w1, b1 = lin(INPUT_DIM, MLP1_DIMS[0])
    w2, b2 = lin(MLP1_DIMS[0], MLP1_DIMS[1])

    # nn.RNN(mlp1_dims[-1], rnn_hidden_dim): init bound = 1/sqrt(hidden)
    rb = 1.0 / jnp.sqrt(jnp.float32(RNN_HIDDEN_DIM))
    wih = jax.random.uniform(next(keys), (MLP1_DIMS[1], RNN_HIDDEN_DIM), jnp.float32, -rb, rb)
    whh = jax.random.uniform(next(keys), (RNN_HIDDEN_DIM, RNN_HIDDEN_DIM), jnp.float32, -rb, rb)
    bih = jax.random.uniform(next(keys), (1, RNN_HIDDEN_DIM), jnp.float32, -rb, rb)
    bhh = jax.random.uniform(next(keys), (1, RNN_HIDDEN_DIM), jnp.float32, -rb, rb)

    # mlp: Linear(self_state_dim + H, 64) + ReLU + Linear(64, 32) + ReLU + Linear(32, 1)
    joint_dim = SELF_STATE_DIM + RNN_HIDDEN_DIM
    w3_full, b3 = lin(joint_dim, MLP_DIMS[0])
    w3s = w3_full[:SELF_STATE_DIM, :]
    w3h = w3_full[SELF_STATE_DIM:, :]
    w4, b4 = lin(MLP_DIMS[0], MLP_DIMS[1])
    w5, b5 = lin(MLP_DIMS[1], MLP_DIMS[2])

    return (w1, b1, w2, b2, wih, whh, bih, bhh, w3s, w3h, b3, w4, b4, w5, b5)


def pack_params(params):
    """Fold mlp1's second linear into the RNN input projection (exact algebra),
    transpose everything to feature-major, and pack into one lane-dense
    (PARAM_ROWS, 128) f32 slab."""
    (w1, b1, w2, b2, wih, whh, bih, bhh, w3s, w3h, b3, w4, b4, w5, b5) = params
    w_fold = jnp.dot(w2, wih)                       # (64, 32)
    b_fold = jnp.dot(b2, wih) + bih + bhh           # (1, 32)
    vals = dict(
        w1T=w1.T, b1=b1.T,
        w_foldT=w_fold.T, b_fold=b_fold.T,
        whhT=whh.T,
        w3sT=w3s.T, w3hT=w3h.T, b3=b3.T,
        w4T=w4.T, b4=b4.T,
        w5T=w5.T, b5=b5.T,
    )
    slab = jnp.zeros((PARAM_ROWS, PARAM_LANES), jnp.float32)
    for name, (off, r, c) in PARAM_LAYOUT.items():
        slab = slab.at[off:off + r, :c].set(vals[name].astype(jnp.float32))
    return slab


def value_network2(state, params_slab, *, b_tile=None):
    """state: (B, N, D). Returns (B, 1)."""
    B, N, D = state.shape

    # Batch tile: multiple of 128 so the batch sits densely in the lane axis.
    # Default: aim for >= 2 grid steps (feeds both v7x TensorCores) while keeping
    # tiles big enough (<= 512) to amortize per-grid-step overhead on v5e/v6e.
    if b_tile is None:
        bt = min(512, max(128, _round_up(-(-B // 2), 128)))
    else:
        bt = max(128, _round_up(b_tile, 128))
    b_pad = _round_up(B, bt)
    num_tiles = b_pad // bt

    # ---- layout plumbing in the wrapper (XLA side), not in the kernel ----
    st = state
    if b_pad != B:
        st = jnp.pad(st, ((0, b_pad - B), (0, 0), (0, 0)))
    # (B_pad, N, D) -> (tiles, bt, N, D) -> (tiles, D, N, bt) -> (tiles, D, N*bt)
    # feature-major per tile: rows = input features, lanes = (timestep, batch-in-tile)
    st = st.reshape(num_tiles, bt, N, D).transpose(0, 3, 2, 1).reshape(num_tiles, D, N * bt)

    out = pl.pallas_call(
        value_network2_kernel,
        out_shape=jax.ShapeDtypeStruct((num_tiles, 1, bt), jnp.float32),
        grid_spec=pltpu.PrefetchScalarGridSpec(
            num_scalar_prefetch=0,
            grid=(num_tiles,),
            in_specs=[
                pl.BlockSpec((1, D, N * bt), lambda i: (i, 0, 0)),            # state tile
                pl.BlockSpec((PARAM_ROWS, PARAM_LANES), lambda i: (0, 0)),     # weights: resident
            ],
            out_specs=pl.BlockSpec((1, 1, bt), lambda i: (i, 0, 0)),           # lane-dense out
            scratch_shapes=[pltpu.VMEM((RNN_HIDDEN_DIM, N * bt), jnp.float32)],
        ),
        compiler_params=pltpu.CompilerParams(
            dimension_semantics=("parallel",)),   # batch tiles split across TCs on v7x
    )(st, params_slab)

    return out.reshape(b_pad, 1)[:B]


def value_network2_ref(state, params):
    """Pure-JAX reference of the same forward using the RAW (unfolded) params."""
    (w1, b1, w2, b2, wih, whh, bih, bhh, w3s, w3h, b3, w4, b4, w5, b5) = params
    B, N, D = state.shape
    x = state.reshape(B * N, D)
    h = jnp.maximum(x @ w1 + b1, 0.0)
    y = (h @ w2 + b2).reshape(B, N, -1)
    hid = jnp.zeros((B, RNN_HIDDEN_DIM), jnp.float32)
    for t in range(N):
        hid = jnp.tanh(y[:, t, :] @ wih + hid @ whh + bih + bhh)
    self_state = state[:, 0, :SELF_STATE_DIM]
    z = jnp.maximum(self_state @ w3s + hid @ w3h + b3, 0.0)
    z = jnp.maximum(z @ w4 + b4, 0.0)
    return z @ w5 + b5


if __name__ == "__main__":
    # TODO(synk): variable-length (pack_padded_sequence) path not implemented;
    # this covers the non-tuple input path (full-length sequences), as before.
    key = jax.random.PRNGKey(0)
    k_state, k_params, k_state2 = jax.random.split(key, 3)

    params = init_params(k_params)
    params_slab = pack_params(params)

    # small demo shapes consistent with the module
    B, N = 2, 8
    state = jax.random.normal(k_state, (B, N, INPUT_DIM), dtype=jnp.float32)

    value = jax.block_until_ready(value_network2(state, params_slab))
    ref = value_network2_ref(state, params)
    assert value.shape == (B, MLP_DIMS[-1])
    assert jnp.allclose(value, ref, atol=1e-4, rtol=1e-4)

    # second check: exercise the multi-tile batch grid + padding path
    # (B=300, bt=128 -> grid=3, padded to 384)
    B2, N2 = 300, 5
    state2 = jax.random.normal(k_state2, (B2, N2, INPUT_DIM), dtype=jnp.float32)
    value2 = jax.block_until_ready(value_network2(state2, params_slab, b_tile=128))
    ref2 = value_network2_ref(state2, params)
    assert value2.shape == (B2, MLP_DIMS[-1])
    assert jnp.allclose(value2, ref2, atol=1e-4, rtol=1e-4)

    print("KERNEL_OK")
</pallas_src>

<mosaic_0001>
module attributes {stable_mosaic.version = 11 : i64} {
  func.func @value_network2_kernel(%arg0: i32, %arg1: memref<1x13x1024xf32, #tpu.memory_space<vmem>>, %arg2: memref<496x128xf32, #tpu.memory_space<vmem>>, %arg3: memref<1x1x128xf32, #tpu.memory_space<vmem>>, %arg4: memref<32x1024xf32, #tpu.memory_space<vmem>>) attributes {dimension_semantics = [#tpu.dimension_semantics<parallel>], iteration_bounds = array<i64: 1>, scalar_prefetch = 0 : i64, scratch_operands = 1 : i64, tpu.core_type = #tpu.core_type<tc>, window_params = [{transform_indices = @transform_0, window_bounds = array<i64: 1, 13, 1024>}, {pipeline_mode = #tpu.pipeline_mode<synchronous>, transform_indices = @transform_1, window_bounds = array<i64: 496, 128>}, {transform_indices = @transform_2, window_bounds = array<i64: 1, 1, 128>}]} {
    %c0 = arith.constant 0 : index
    %c0_0 = arith.constant 0 : index
    %c0_1 = arith.constant 0 : index
    %0 = vector.load %arg1[%c0, %c0_0, %c0_1] : memref<1x13x1024xf32, #tpu.memory_space<vmem>>, vector<1x13x1024xf32>
    %1 = vector.shape_cast %0 : vector<1x13x1024xf32> to vector<13x1024xf32>
    %c0_2 = arith.constant 0 : index
    %c0_3 = arith.constant 0 : index
    %2 = vector.load %arg2[%c0_2, %c0_3] : memref<496x128xf32, #tpu.memory_space<vmem>>, vector<64x13xf32>
    %cst = arith.constant dense<0.000000e+00> : vector<64x1024xf32>
    %3 = tpu.matmul %2, %1, %cst {dimension_numbers = #tpu.dot_dimension_numbers<[1], [0], [0], [1], [0, 0, 1, 1], [], []>} : vector<64x13xf32>, vector<13x1024xf32>, vector<64x1024xf32> -> vector<64x1024xf32>
    %c64 = arith.constant 64 : index
    %c0_4 = arith.constant 0 : index
    %4 = vector.load %arg2[%c64, %c0_4] : memref<496x128xf32, #tpu.memory_space<vmem>>, vector<64x1xf32>
    %5 = vector.broadcast %4 : vector<64x1xf32> to vector<64x1024xf32>
    %6 = arith.addf %3, %5 : vector<64x1024xf32>
    %cst_5 = arith.constant 0.000000e+00 : f32
    %7 = vector.broadcast %cst_5 : f32 to vector<64x1024xf32>
    %8 = arith.maximumf %6, %7 : vector<64x1024xf32>
    %c128 = arith.constant 128 : index
    %c0_6 = arith.constant 0 : index
    %9 = vector.load %arg2[%c128, %c0_6] : memref<496x128xf32, #tpu.memory_space<vmem>>, vector<32x64xf32>
    %cst_7 = arith.constant dense<0.000000e+00> : vector<32x1024xf32>
    %10 = tpu.matmul %9, %8, %cst_7 {dimension_numbers = #tpu.dot_dimension_numbers<[1], [0], [0], [1], [0, 0, 1, 1], [], []>} : vector<32x64xf32>, vector<64x1024xf32>, vector<32x1024xf32> -> vector<32x1024xf32>
    %c160 = arith.constant 160 : index
    %c0_8 = arith.constant 0 : index
    %11 = vector.load %arg2[%c160, %c0_8] : memref<496x128xf32, #tpu.memory_space<vmem>>, vector<32x1xf32>
    %12 = vector.broadcast %11 : vector<32x1xf32> to vector<32x1024xf32>
    %13 = arith.addf %10, %12 : vector<32x1024xf32>
    %c0_9 = arith.constant 0 : index
    %c0_10 = arith.constant 0 : index
    %14 = vector.load %arg4[%c0_9, %c0_10] : memref<32x1024xf32, #tpu.memory_space<vmem>>, vector<32x1024xf32>
    tpu.vector_store %arg4[%c0_9, %c0_10], %13 {strides = array<i32>} : memref<32x1024xf32, #tpu.memory_space<vmem>>, vector<32x1024xf32>,
    %c192 = arith.constant 192 : index
    %c0_11 = arith.constant 0 : index
    %15 = vector.load %arg2[%c192, %c0_11] : memref<496x128xf32, #tpu.memory_space<vmem>>, vector<32x32xf32>
    %cst_12 = arith.constant 0.000000e+00 : f32
    %16 = vector.broadcast %cst_12 : f32 to vector<32x128xf32>
    %c0_13 = arith.constant 0 : index
    %c0_14 = arith.constant 0 : index
    %17 = vector.load %arg4[%c0_13, %c0_14] : memref<32x1024xf32, #tpu.memory_space<vmem>>, vector<32x128xf32>
    %cst_15 = arith.constant dense<0.000000e+00> : vector<32x128xf32>
    %18 = tpu.matmul %15, %16, %cst_15 {dimension_numbers = #tpu.dot_dimension_numbers<[1], [0], [0], [1], [0, 0, 1, 1], [], []>} : vector<32x32xf32>, vector<32x128xf32>, vector<32x128xf32> -> vector<32x128xf32>
    %19 = arith.addf %17, %18 : vector<32x128xf32>
    %20 = math.tanh %19 : vector<32x128xf32>
    %c0_16 = arith.constant 0 : index
    %c128_17 = arith.constant 128 : index
    %21 = vector.load %arg4[%c0_16, %c128_17] : memref<32x1024xf32, #tpu.memory_space<vmem>>, vector<32x128xf32>
    %cst_18 = arith.constant dense<0.000000e+00> : vector<32x128xf32>
    %22 = tpu.matmul %15, %20, %cst_18 {dimension_numbers = #tpu.dot_dimension_numbers<[1], [0], [0], [1], [0, 0, 1, 1], [], []>} : vector<32x32xf32>, vector<32x128xf32>, vector<32x128xf32> -> vector<32x128xf32>
    %23 = arith.addf %21, %22 : vector<32x128xf32>
    %24 = math.tanh %23 : vector<32x128xf32>
    %c0_19 = arith.constant 0 : index
    %c256 = arith.constant 256 : index
    %25 = vector.load %arg4[%c0_19, %c256] : memref<32x1024xf32, #tpu.memory_space<vmem>>, vector<32x128xf32>
    %cst_20 = arith.constant dense<0.000000e+00> : vector<32x128xf32>
    %26 = tpu.matmul %15, %24, %cst_20 {dimension_numbers = #tpu.dot_dimension_numbers<[1], [0], [0], [1], [0, 0, 1, 1], [], []>} : vector<32x32xf32>, vector<32x128xf32>, vector<32x128xf32> -> vector<32x128xf32>
    %27 = arith.addf %25, %26 : vector<32x128xf32>
    %28 = math.tanh %27 : vector<32x128xf32>
    %c0_21 = arith.constant 0 : index
    %c384 = arith.constant 384 : index
    %29 = vector.load %arg4[%c0_21, %c384] : memref<32x1024xf32, #tpu.memory_space<vmem>>, vector<32x128xf32>
    %cst_22 = arith.constant dense<0.000000e+00> : vector<32x128xf32>
    %30 = tpu.matmul %15, %28, %cst_22 {dimension_numbers = #tpu.dot_dimension_numbers<[1], [0], [0], [1], [0, 0, 1, 1], [], []>} : vector<32x32xf32>, vector<32x128xf32>, vector<32x128xf32> -> vector<32x128xf32>
    %31 = arith.addf %29, %30 : vector<32x128xf32>
    %32 = math.tanh %31 : vector<32x128xf32>
    %c0_23 = arith.constant 0 : index
    %c512 = arith.constant 512 : index
    %33 = vector.load %arg4[%c0_23, %c512] : memref<32x1024xf32, #tpu.memory_space<vmem>>, vector<32x128xf32>
    %cst_24 = arith.constant dense<0.000000e+00> : vector<32x128xf32>
    %34 = tpu.matmul %15, %32, %cst_24 {dimension_numbers = #tpu.dot_dimension_numbers<[1], [0], [0], [1], [0, 0, 1, 1], [], []>} : vector<32x32xf32>, vector<32x128xf32>, vector<32x128xf32> -> vector<32x128xf32>
    %35 = arith.addf %33, %34 : vector<32x128xf32>
    %36 = math.tanh %35 : vector<32x128xf32>
    %c0_25 = arith.constant 0 : index
    %c640 = arith.constant 640 : index
    %37 = vector.load %arg4[%c0_25, %c640] : memref<32x1024xf32, #tpu.memory_space<vmem>>, vector<32x128xf32>
    %cst_26 = arith.constant dense<0.000000e+00> : vector<32x128xf32>
    %38 = tpu.matmul %15, %36, %cst_26 {dimension_numbers = #tpu.dot_dimension_numbers<[1], [0], [0], [1], [0, 0, 1, 1], [], []>} : vector<32x32xf32>, vector<32x128xf32>, vector<32x128xf32> -> vector<32x128xf32>
    %39 = arith.addf %37, %38 : vector<32x128xf32>
    %40 = math.tanh %39 : vector<32x128xf32>
    %c0_27 = arith.constant 0 : index
    %c768 = arith.constant 768 : index
    %41 = vector.load %arg4[%c0_27, %c768] : memref<32x1024xf32, #tpu.memory_space<vmem>>, vector<32x128xf32>
    %cst_28 = arith.constant dense<0.000000e+00> : vector<32x128xf32>
    %42 = tpu.matmul %15, %40, %cst_28 {dimension_numbers = #tpu.dot_dimension_numbers<[1], [0], [0], [1], [0, 0, 1, 1], [], []>} : vector<32x32xf32>, vector<32x128xf32>, vector<32x128xf32> -> vector<32x128xf32>
    %43 = arith.addf %41, %42 : vector<32x128xf32>
    %44 = math.tanh %43 : vector<32x128xf32>
    %c0_29 = arith.constant 0 : index
    %c896 = arith.constant 896 : index
    %45 = vector.load %arg4[%c0_29, %c896] : memref<32x1024xf32, #tpu.memory_space<vmem>>, vector<32x128xf32>
    %cst_30 = arith.constant dense<0.000000e+00> : vector<32x128xf32>
    %46 = tpu.matmul %15, %44, %cst_30 {dimension_numbers = #tpu.dot_dimension_numbers<[1], [0], [0], [1], [0, 0, 1, 1], [], []>} : vector<32x32xf32>, vector<32x128xf32>, vector<32x128xf32> -> vector<32x128xf32>
    %47 = arith.addf %45, %46 : vector<32x128xf32>
    %48 = math.tanh %47 : vector<32x128xf32>
    %49 = vector.extract_strided_slice %1 {offsets = [0, 0], sizes = [6, 128], strides = [1, 1]} : vector<13x1024xf32> to vector<6x128xf32>
    %c224 = arith.constant 224 : index
    %c0_31 = arith.constant 0 : index
    %50 = vector.load %arg2[%c224, %c0_31] : memref<496x128xf32, #tpu.memory_space<vmem>>, vector<64x6xf32>
    %cst_32 = arith.constant dense<0.000000e+00> : vector<64x128xf32>
    %51 = tpu.matmul %50, %49, %cst_32 {dimension_numbers = #tpu.dot_dimension_numbers<[1], [0], [0], [1], [0, 0, 1, 1], [], []>} : vector<64x6xf32>, vector<6x128xf32>, vector<64x128xf32> -> vector<64x128xf32>
    %c288 = arith.constant 288 : index
    %c0_33 = arith.constant 0 : index
    %52 = vector.load %arg2[%c288, %c0_33] : memref<496x128xf32, #tpu.memory_space<vmem>>, vector<64x32xf32>
    %cst_34 = arith.constant dense<0.000000e+00> : vector<64x128xf32>
    %53 = tpu.matmul %52, %48, %cst_34 {dimension_numbers = #tpu.dot_dimension_numbers<[1], [0], [0], [1], [0, 0, 1, 1], [], []>} : vector<64x32xf32>, vector<32x128xf32>, vector<64x128xf32> -> vector<64x128xf32>
    %54 = arith.addf %51, %53 : vector<64x128xf32>
    %c352 = arith.constant 352 : index
    %c0_35 = arith.constant 0 : index
    %55 = vector.load %arg2[%c352, %c0_35] : memref<496x128xf32, #tpu.memory_space<vmem>>, vector<64x1xf32>
    %56 = vector.broadcast %55 : vector<64x1xf32> to vector<64x128xf32>
    %57 = arith.addf %54, %56 : vector<64x128xf32>
    %cst_36 = arith.constant 0.000000e+00 : f32
    %58 = vector.broadcast %cst_36 : f32 to vector<64x128xf32>
    %59 = arith.maximumf %57, %58 : vector<64x128xf32>
    %c416 = arith.constant 416 : index
    %c0_37 = arith.constant 0 : index
    %60 = vector.load %arg2[%c416, %c0_37] : memref<496x128xf32, #tpu.memory_space<vmem>>, vector<32x64xf32>
    %cst_38 = arith.constant dense<0.000000e+00> : vector<32x128xf32>
    %61 = tpu.matmul %60, %59, %cst_38 {dimension_numbers = #tpu.dot_dimension_numbers<[1], [0], [0], [1], [0, 0, 1, 1], [], []>} : vector<32x64xf32>, vector<64x128xf32>, vector<32x128xf32> -> vector<32x128xf32>
    %c448 = arith.constant 448 : index
    %c0_39 = arith.constant 0 : index
    %62 = vector.load %arg2[%c448, %c0_39] : memref<496x128xf32, #tpu.memory_space<vmem>>, vector<32x1xf32>
    %63 = vector.broadcast %62 : vector<32x1xf32> to vector<32x128xf32>
    %64 = arith.addf %61, %63 : vector<32x128xf32>
    %cst_40 = arith.constant 0.000000e+00 : f32
    %65 = vector.broadcast %cst_40 : f32 to vector<32x128xf32>
    %66 = arith.maximumf %64, %65 : vector<32x128xf32>
    %c480 = arith.constant 480 : index
    %c0_41 = arith.constant 0 : index
    %67 = vector.load %arg2[%c480, %c0_41] : memref<496x128xf32, #tpu.memory_space<vmem>>, vector<1x32xf32>
    %cst_42 = arith.constant dense<0.000000e+00> : vector<1x128xf32>
    %68 = tpu.matmul %67, %66, %cst_42 {dimension_numbers = #tpu.dot_dimension_numbers<[1], [0], [0], [1], [0, 0, 1, 1], [], []>} : vector<1x32xf32>, vector<32x128xf32>, vector<1x128xf32> -> vector<1x128xf32>
    %c488 = arith.constant 488 : index
    %c0_43 = arith.constant 0 : index
    %69 = vector.load %arg2[%c488, %c0_43] : memref<496x128xf32, #tpu.memory_space<vmem>>, vector<1x1xf32>
    %70 = vector.broadcast %69 : vector<1x1xf32> to vector<1x128xf32>
    %71 = arith.addf %68, %70 : vector<1x128xf32>
    %c0_44 = arith.constant 0 : index
    %c0_45 = arith.constant 0 : index
    %c0_46 = arith.constant 0 : index
    %72 = vector.load %arg3[%c0_44, %c0_45, %c0_46] : memref<1x1x128xf32, #tpu.memory_space<vmem>>, vector<1x1x128xf32>
    %73 = vector.shape_cast %72 : vector<1x1x128xf32> to vector<1x128xf32>
    %74 = vector.shape_cast %71 : vector<1x128xf32> to vector<1x1x128xf32>
    tpu.vector_store %arg3[%c0_44, %c0_45, %c0_46], %74 {strides = array<i32>} : memref<1x1x128xf32, #tpu.memory_space<vmem>>, vector<1x1x128xf32>,
    return
  }
  func.func @transform_0(%arg0: i32) -> (i32, i32, i32) {
    %c0_i32 = arith.constant 0 : i32
    %c0_i32_0 = arith.constant 0 : i32
    %c0_i32_1 = arith.constant 0 : i32
    return %arg0, %c0_i32, %c0_i32_0 : i32, i32, i32
  }
  func.func @transform_1(%arg0: i32) -> (i32, i32) {
    %c0_i32 = arith.constant 0 : i32
    %c0_i32_0 = arith.constant 0 : i32
    %c0_i32_1 = arith.constant 0 : i32
    return %c0_i32, %c0_i32_0 : i32, i32
  }
  func.func @transform_2(%arg0: i32) -> (i32, i32, i32) {
    %c0_i32 = arith.constant 0 : i32
    %c0_i32_0 = arith.constant 0 : i32
    %c0_i32_1 = arith.constant 0 : i32
    return %arg0, %c0_i32, %c0_i32_0 : i32, i32, i32
  }
}

</mosaic_0001>

<llo_original>
// kernel: tpu_custom_call.1
$region0: #{tpu_custom_call.1}
  #allocation0 [shape = 'u32[]', space=smem, size = 0x4, offset = 0x4, fixed_abs, tag = 'smem constant byte address 0x4 - core index']
  #allocation1 [shape = 'u32[144,128]{1,0:T(1,128)}', space=vmem, size = 0x12000, scoped, tag = 'internal scratch']
  #allocation2 [shape = 'f32[32,1024]{1,0:T(8,128)}', space=vmem, size = 0x20000, scoped, tag = 'scratch operand']
  %s0 = inlined_call_operand.vmem [shape: f32[1,13,1024], index: 0, kind: input, shape index: {}]
  %s1 = inlined_call_operand.hbm [shape: f32[496,128], index: 1, kind: input, shape index: {}]
  %s2 = inlined_call_operand.hbm [shape: f32[1,1,128], index: 2, kind: output, shape index: {}]
  %s3 = sld [smem:[#allocation0]]
  $region22: #{tpu_custom_call.1} parent=0
    _
  %s5 = ssub.s32 1, %s3
  %s6 = scalar_select 0, %s5, %s3
  $region1: #{tpu_custom_call.1} parent=0
    #allocation3 [shape = 'u8[253952]{0}', space=vmem, size = 0x3e000, scoped, tag = 'input window, operand 1, single buffered']
    #allocation4 [shape = 's32[1]{0}', space=sflag, size = 0x4, scoped, tag = 'scoped memory for tpu_custom_call.1']
    #allocation5 [shape = 's32[1]{0}', space=sflag, size = 0x4, scoped, tag = 'scoped memory for tpu_custom_call.1']
    #allocation6 [shape = 'u8[512]{0}', space=vmem, size = 0x400, scoped, tag = 'output window, operand 0, single buffered']
    %7 = vsyncpa [#allocation4], 0
    %8 = vsyncpa [#allocation5], 0
    // Predicated region
    $region2: #{tpu_custom_call.1} parent=1 // pred_check
      _
    $region3: #{tpu_custom_call.1} parent=1 // pred_check_branch
      %10 = sbr.rel (0) target = $region5
    $region4: #{tpu_custom_call.1} parent=1 // pred_region
      _
    $region5: #{tpu_custom_call.1} parent=1 // pred_fallthru
      _
    // Predicated region
    $region6: #{tpu_custom_call.1} parent=1 // pred_check
      _
    $region7: #{tpu_custom_call.1} parent=1 // pred_check_branch
      %12 = sbr.rel (0) target = $region9
    $region8: #{tpu_custom_call.1} parent=1 // pred_region
      %s14 = ssub.s32 7936, 7936
      %15 = vsyncadd [#allocation4], %s14
      %s16 = sshll.u32 [#allocation3], 4
      %s17 = int_to_ptr.vmem [resolvable:$true] %s16
      %22 = dma.hbm_to_vmem [thread:$0]  %s1, 7936, %s17, [#allocation4], 128, 128, 8
    $region9: #{tpu_custom_call.1} parent=1 // pred_fallthru
      _
    // Predicated region
    $region10: #{tpu_custom_call.1} parent=1 // pred_check
      _
    $region11: #{tpu_custom_call.1} parent=1 // pred_check_branch
      %24 = sbr.rel (0) target = $region13
    $region12: #{tpu_custom_call.1} parent=1 // pred_region
      %25 = dma.done [#allocation4], 7936
    $region13: #{tpu_custom_call.1} parent=1 // pred_fallthru
      _
    %v26 = vld [vmem:[%s0] sm:$0xff]
    %v27 = vld [vmem:[%s0 + $0x8] sm:$0xff]
    %v28 = vld [vmem:[%s0 + $0x10] sm:$0xff]
    %v29 = vld [vmem:[%s0 + $0x18] sm:$0xff]
    %v30 = vld [vmem:[%s0 + $0x20] sm:$0xff]
    %v31 = vld [vmem:[%s0 + $0x28] sm:$0xff]
    %v32 = vld [vmem:[%s0 + $0x30] sm:$0xff]
    %v33 = vld [vmem:[%s0 + $0x38] sm:$0xff]
    %v34 = vld [vmem:[%s0 + $0x40] sm:$0x1f]
    %v35 = vld [vmem:[%s0 + $0x48] sm:$0x1f]
    %v36 = vld [vmem:[%s0 + $0x50] sm:$0x1f]
    %v37 = vld [vmem:[%s0 + $0x58] sm:$0x1f]
    %v38 = vld [vmem:[%s0 + $0x60] sm:$0x1f]
    %v39 = vld [vmem:[%s0 + $0x68] sm:$0x1f]
    %v40 = vld [vmem:[%s0 + $0x70] sm:$0x1f]
    %v41 = vld [vmem:[%s0 + $0x78] sm:$0x1f]
    %v42 = vld [vmem:[#allocation3] sm:$0xff]
    %v43 = vld [vmem:[#allocation3 + $0x8] sm:$0xff]
    %v44 = vld [vmem:[#allocation3 + $0x10] sm:$0xff]
    %v45 = vld [vmem:[#allocation3 + $0x18] sm:$0xff]
    %v46 = vld [vmem:[#allocation3 + $0x20] sm:$0xff]
    %v47 = vld [vmem:[#allocation3 + $0x28] sm:$0xff]
    %v48 = vld [vmem:[#allocation3 + $0x30] sm:$0xff]
    %v49 = vld [vmem:[#allocation3 + $0x38] sm:$0xff]
    %v50 = vld [vmem:[#allocation3 + $0x40] sm:$0xff]
    %v51 = vld [vmem:[#allocation3 + $0x48] sm:$0xff]
    %v52 = vld [vmem:[#allocation3 + $0x50] sm:$0xff]
    %v53 = vld [vmem:[#allocation3 + $0x58] sm:$0xff]
    %v54 = vld [vmem:[#allocation3 + $0x60] sm:$0xff]
    %v55 = vld [vmem:[#allocation3 + $0x68] sm:$0xff]
    %v56 = vld [vmem:[#allocation3 + $0x70] sm:$0xff]
    %v57 = vld [vmem:[#allocation3 + $0x78] sm:$0xff]
    %59 = vset.pattern.permute.xlu0 0
    %60 = vperm.xlu0 %59, %v50
    %v61 = vpop.permute.xlu0 %60
    %64 = vset.pattern.permute.xlu0 0
    %65 = vperm.xlu0 %64, %v51
    %v66 = vpop.permute.xlu0 %65
    %69 = vset.pattern.permute.xlu0 0
    %70 = vperm.xlu0 %69, %v52
    %v71 = vpop.permute.xlu0 %70
    %74 = vset.pattern.permute.xlu0 0
    %75 = vperm.xlu0 %74, %v53
    %v76 = vpop.permute.xlu0 %75
    %79 = vset.pattern.permute.xlu0 0
    %80 = vperm.xlu0 %79, %v54
    %v81 = vpop.permute.xlu0 %80
    %84 = vset.pattern.permute.xlu0 0
    %85 = vperm.xlu0 %84, %v55
    %v86 = vpop.permute.xlu0 %85
    %89 = vset.pattern.permute.xlu0 0
    %90 = vperm.xlu0 %89, %v56
    %v91 = vpop.permute.xlu0 %90
    %94 = vset.pattern.permute.xlu0 0
    %95 = vperm.xlu0 %94, %v57
    %v96 = vpop.permute.xlu0 %95
    %vm98 = vcmask 105472
    %v100 = vsel %vm98, %v42, 0
    %v103 = vsel %vm98, %v43, 0
    %v106 = vsel %vm98, %v44, 0
    %v109 = vsel %vm98, %v45, 0
    %v112 = vsel %vm98, %v46, 0
    %v115 = vsel %vm98, %v47, 0
    %v118 = vsel %vm98, %v48, 0
    %v121 = vsel %vm98, %v49, 0
    %vm123 = vcmask 1044480
    %v125 = vsel %vm123, %v34, 0
    %v128 = vsel %vm123, %v35, 0
    %v131 = vsel %vm123, %v36, 0
    %v134 = vsel %vm123, %v37, 0
    %v137 = vsel %vm123, %v38, 0
    %v140 = vsel %vm123, %v39, 0
    %v143 = vsel %vm123, %v40, 0
    %v146 = vsel %vm123, %v41, 0
    %148 = vmatprep.subr.mxu0 %v27
    %149 = vmatpush1.msra.mxu0 %v26
    %150 = vmatprep.subr.mxu0 %v128
    %151 = vmatpush1.msra.mxu0 %v125
    %152 = vmatprep.subr.mxu0 0.0
    %153 = vmatpush1.msra.mxu0 0.0
    %154 = vmatprep.subr.mxu0 0.0
    %155 = vmatpush1.msra.mxu0 0.0
    %156 = vmatprep.subr.mxu0 0.0
    %157 = vmatpush1.msra.mxu0 0.0
    %158 = vmatprep.subr.mxu0 0.0
    %159 = vmatpush1.msra.mxu0 0.0
    %160 = vmatprep.subr.mxu0 0.0
    %161 = vmatpush1.msra.mxu0 0.0
    %162 = vmatprep.subr.mxu0 0.0
    %163 = vmatpush1.msra.mxu0 0.0
    %164 = vmatprep.subr.mxu0 0.0
    %165 = vmatpush1.msra.mxu0 0.0
    %166 = vmatprep.subr.mxu0 0.0
    %167 = vmatpush1.msra.mxu0 0.0
    %168 = vmatprep.subr.mxu0 0.0
    %169 = vmatpush1.msra.mxu0 0.0
    %170 = vmatprep.subr.mxu0 0.0
    %171 = vmatpush1.msra.mxu0 0.0
    %172 = vmatprep.subr.mxu0 0.0
    %173 = vmatpush1.msra.mxu0 0.0
    %174 = vmatprep.subr.mxu0 0.0
    %175 = vmatpush1.msra.mxu0 0.0
    %176 = vmatprep.subr.mxu0 0.0
    %177 = vmatpush1.msra.mxu0 0.0
    %178 = vmatprep.subr.mxu0 0.0
    %179 = vmatpush1.msra.mxu0 0.0
    %180 = vmatprep.subr.mxu0 0.0
    %181 = vmatpush1.msra.mxu0 0.0
    %182 = vmatprep.subr.mxu0 0.0
    %183 = vmatpush1.msra.mxu0 0.0
    %184 = vmatprep.subr.mxu0 0.0
    %185 = vmatpush1.msra.mxu0 0.0
    %186 = vmatprep.subr.mxu0 0.0
    %187 = vmatpush1.msra.mxu0 0.0
    %188 = vmatprep.subr.mxu0 0.0
    %189 = vmatpush1.msra.mxu0 0.0
    %190 = vmatprep.subr.mxu0 0.0
    %191 = vmatpush1.msra.mxu0 0.0
    %192 = vmatprep.subr.mxu0 0.0
    %193 = vmatpush1.msra.mxu0 0.0
    %194 = vmatprep.subr.mxu0 0.0
    %195 = vmatpush1.msra.mxu0 0.0
    %196 = vmatprep.subr.mxu0 0.0
    %197 = vmatpush1.msra.mxu0 0.0
    %198 = vmatprep.subr.mxu0 0.0
    %199 = vmatpush1.msra.mxu0 0.0
    %200 = vmatprep.subr.mxu0 0.0
    %201 = vmatpush1.msra.mxu0 0.0
    %202 = vmatprep.subr.mxu0 0.0
    %203 = vmatpush1.msra.mxu0 0.0
    %204 = vmatprep.subr.mxu0 0.0
    %205 = vmatpush1.msra.mxu0 0.0
    %206 = vmatprep.subr.mxu0 0.0
    %207 = vmatpush1.msra.mxu0 0.0
    %208 = vmatprep.subr.mxu0 0.0
    %209 = vmatpush1.msra.mxu0 0.0
    %210 = vmatprep.subr.mxu0 0.0
    %211 = vmatpush1.msra.mxu0 0.0
    %212 = vmatprep.mubr.f32.mxu0 0.0
    %213 = vmatmul.mubr.f32.gmra.mrb[0].mxu0 %v100
    %v214 = vpop.f32.mrb[0].mxu0
    %v215 = vadd.f32 %v61, %v214
    %v216 = vpop.f32.mrb[0].mxu0
    %v217 = vadd.f32 %v61, %v216
    %218 = vmatprep.mubr.f32.mxu0 0.0
    %219 = vmatmul.mubr.f32.gmra.mrb[0].mxu0 %v103
    %v220 = vpop.f32.mrb[0].mxu0
    %v221 = vadd.f32 %v66, %v220
    %v222 = vpop.f32.mrb[0].mxu0
    %v223 = vadd.f32 %v66, %v222
    %224 = vmatprep.mubr.f32.mxu0 0.0
    %225 = vmatmul.mubr.f32.gmra.mrb[0].mxu0 %v106
    %v226 = vpop.f32.mrb[0].mxu0
    %v227 = vadd.f32 %v71, %v226
    %v228 = vpop.f32.mrb[0].mxu0
    %v229 = vadd.f32 %v71, %v228
    %230 = vmatprep.mubr.f32.mxu0 0.0
    %231 = vmatmul.mubr.f32.gmra.mrb[0].mxu0 %v109
    %v232 = vpop.f32.mrb[0].mxu0
    %v233 = vadd.f32 %v76, %v232
    %v234 = vpop.f32.mrb[0].mxu0
    %v235 = vadd.f32 %v76, %v234
    %236 = vmatprep.mubr.f32.mxu0 0.0
    %237 = vmatmul.mubr.f32.gmra.mrb[0].mxu0 %v112
    %v238 = vpop.f32.mrb[0].mxu0
    %v239 = vadd.f32 %v81, %v238
    %v240 = vpop.f32.mrb[0].mxu0
    %v241 = vadd.f32 %v81, %v240
    %242 = vmatprep.mubr.f32.mxu0 0.0
    %243 = vmatmul.mubr.f32.gmra.mrb[0].mxu0 %v115
    %v244 = vpop.f32.mrb[0].mxu0
    %v245 = vadd.f32 %v86, %v244
    %v246 = vpop.f32.mrb[0].mxu0
    %v247 = vadd.f32 %v86, %v246
    %248 = vmatprep.mubr.f32.mxu0 0.0
    %249 = vmatmul.mubr.f32.gmra.mrb[0].mxu0 %v118
    %v250 = vpop.f32.mrb[0].mxu0
    %v251 = vadd.f32 %v91, %v250
    %v252 = vpop.f32.mrb[0].mxu0
    %v253 = vadd.f32 %v91, %v252
    %254 = vmatprep.mubr.f32.mxu0 0.0
    %255 = vmatmul.mubr.f32.gmra.mrb[0].mxu0 %v121
    %v256 = vpop.f32.mrb[0].mxu0
    %v257 = vadd.f32 %v96, %v256
    %v258 = vpop.f32.mrb[0].mxu0
    %v259 = vadd.f32 %v96, %v258
    %260 = vdwg.mxu0
    %261 = vmatprep.subr.mxu0 %v29
    %262 = vmatpush1.msra.mxu0 %v28
    %263 = vmatprep.subr.mxu0 %v134
    %264 = vmatpush1.msra.mxu0 %v131
    %265 = vmatprep.subr.mxu0 0.0
    %266 = vmatpush1.msra.mxu0 0.0
    %267 = vmatprep.subr.mxu0 0.0
    %268 = vmatpush1.msra.mxu0 0.0
    %269 = vmatprep.subr.mxu0 0.0
    %270 = vmatpush1.msra.mxu0 0.0
    %271 = vmatprep.subr.mxu0 0.0
    %272 = vmatpush1.msra.mxu0 0.0
    %273 = vmatprep.subr.mxu0 0.0
    %274 = vmatpush1.msra.mxu0 0.0
    %275 = vmatprep.subr.mxu0 0.0
    %276 = vmatpush1.msra.mxu0 0.0
    %277 = vmatprep.subr.mxu0 0.0
    %278 = vmatpush1.msra.mxu0 0.0
    %279 = vmatprep.subr.mxu0 0.0
    %280 = vmatpush1.msra.mxu0 0.0
    %281 = vmatprep.subr.mxu0 0.0
    %282 = vmatpush1.msra.mxu0 0.0
    %283 = vmatprep.subr.mxu0 0.0
    %284 = vmatpush1.msra.mxu0 0.0
    %285 = vmatprep.subr.mxu0 0.0
    %286 = vmatpush1.msra.mxu0 0.0
    %287 = vmatprep.subr.mxu0 0.0
    %288 = vmatpush1.msra.mxu0 0.0
    %289 = vmatprep.subr.mxu0 0.0
    %290 = vmatpush1.msra.mxu0 0.0
    %291 = vmatprep.subr.mxu0 0.0
    %292 = vmatpush1.msra.mxu0 0.0
    %293 = vmatprep.subr.mxu0 0.0
    %294 = vmatpush1.msra.mxu0 0.0
    %295 = vmatprep.subr.mxu0 0.0
    %296 = vmatpush1.msra.mxu0 0.0
    %297 = vmatprep.subr.mxu0 0.0
    %298 = vmatpush1.msra.mxu0 0.0
    %299 = vmatprep.subr.mxu0 0.0
    %300 = vmatpush1.msra.mxu0 0.0
    %301 = vmatprep.subr.mxu0 0.0
    %302 = vmatpush1.msra.mxu0 0.0
    %303 = vmatprep.subr.mxu0 0.0
    %304 = vmatpush1.msra.mxu0 0.0
    %305 = vmatprep.subr.mxu0 0.0
    %306 = vmatpush1.msra.mxu0 0.0
    %307 = vmatprep.subr.mxu0 0.0
    %308 = vmatpush1.msra.mxu0 0.0
    %309 = vmatprep.subr.mxu0 0.0
    %310 = vmatpush1.msra.mxu0 0.0
    %311 = vmatprep.subr.mxu0 0.0
    %312 = vmatpush1.msra.mxu0 0.0
    %313 = vmatprep.subr.mxu0 0.0
    %314 = vmatpush1.msra.mxu0 0.0
    %315 = vmatprep.subr.mxu0 0.0
    %316 = vmatpush1.msra.mxu0 0.0
    %317 = vmatprep.subr.mxu0 0.0
    %318 = vmatpush1.msra.mxu0 0.0
    %319 = vmatprep.subr.mxu0 0.0
    %320 = vmatpush1.msra.mxu0 0.0
    %321 = vmatprep.subr.mxu0 0.0
    %322 = vmatpush1.msra.mxu0 0.0
    %323 = vmatprep.subr.mxu0 0.0
    %324 = vmatpush1.msra.mxu0 0.0
    %325 = vmatprep.mubr.f32.mxu0 0.0
    %326 = vmatmul.mubr.f32.gmra.mrb[0].mxu0 %v100
    %v327 = vpop.f32.mrb[0].mxu0
    %v328 = vadd.f32 %v61, %v327
    %v329 = vpop.f32.mrb[0].mxu0
    %v330 = vadd.f32 %v61, %v329
    %331 = vmatprep.mubr.f32.mxu0 0.0
    %332 = vmatmul.mubr.f32.gmra.mrb[0].mxu0 %v103
    %v333 = vpop.f32.mrb[0].mxu0
    %v334 = vadd.f32 %v66, %v333
    %v335 = vpop.f32.mrb[0].mxu0
    %v336 = vadd.f32 %v66, %v335
    %337 = vmatprep.mubr.f32.mxu0 0.0
    %338 = vmatmul.mubr.f32.gmra.mrb[0].mxu0 %v106
    %v339 = vpop.f32.mrb[0].mxu0
    %v340 = vadd.f32 %v71, %v339
    %v341 = vpop.f32.mrb[0].mxu0
    %v342 = vadd.f32 %v71, %v341
    %343 = vmatprep.mubr.f32.mxu0 0.0
    %344 = vmatmul.mubr.f32.gmra.mrb[0].mxu0 %v109
    %v345 = vpop.f32.mrb[0].mxu0
    %v346 = vadd.f32 %v76, %v345
    %v347 = vpop.f32.mrb[0].mxu0
    %v348 = vadd.f32 %v76, %v347
    %349 = vmatprep.mubr.f32.mxu0 0.0
    %350 = vmatmul.mubr.f32.gmra.mrb[0].mxu0 %v112
    %v351 = vpop.f32.mrb[0].mxu0
    %v352 = vadd.f32 %v81, %v351
    %v353 = vpop.f32.mrb[0].mxu0
    %v354 = vadd.f32 %v81, %v353
    %355 = vmatprep.mubr.f32.mxu0 0.0
    %356 = vmatmul.mubr.f32.gmra.mrb[0].mxu0 %v115
    %v357 = vpop.f32.mrb[0].mxu0
    %v358 = vadd.f32 %v86, %v357
    %v359 = vpop.f32.mrb[0].mxu0
    %v360 = vadd.f32 %v86, %v359
    %361 = vmatprep.mubr.f32.mxu0 0.0
    %362 = vmatmul.mubr.f32.gmra.mrb[0].mxu0 %v118
    %v363 = vpop.f32.mrb[0].mxu0
    %v364 = vadd.f32 %v91, %v363
    %v365 = vpop.f32.mrb[0].mxu0
    %v366 = vadd.f32 %v91, %v365
    %367 = vmatprep.mubr.f32.mxu0 0.0
    %368 = vmatmul.mubr.f32.gmra.mrb[0].mxu0 %v121
    %v369 = vpop.f32.mrb[0].mxu0
    %v370 = vadd.f32 %v96, %v369
    %v371 = vpop.f32.mrb[0].mxu0
    %v372 = vadd.f32 %v96, %v371
    %373 = vdwg.mxu0
    %374 = vmatprep.subr.mxu0 %v31
    %375 = vmatpush1.msra.mxu0 %v30
    %376 = vmatprep.subr.mxu0 %v140
    %377 = vmatpush1.msra.mxu0 %v137
    %378 = vmatprep.subr.mxu0 0.0
    %379 = vmatpush1.msra.mxu0 0.0
    %380 = vmatprep.subr.mxu0 0.0
    %381 = vmatpush1.msra.mxu0 0.0
    %382 = vmatprep.subr.mxu0 0.0
    %383 = vmatpush1.msra.mxu0 0.0
    %384 = vmatprep.subr.mxu0 0.0
    %385 = vmatpush1.msra.mxu0 0.0
    %386 = vmatprep.subr.mxu0 0.0
    %387 = vmatpush1.msra.mxu0 0.0
    %388 = vmatprep.subr.mxu0 0.0
    %389 = vmatpush1.msra.mxu0 0.0
    %390 = vmatprep.subr.mxu0 0.0
    %391 = vmatpush1.msra.mxu0 0.0
    %392 = vmatprep.subr.mxu0 0.0
    %393 = vmatpush1.msra.mxu0 0.0
    %394 = vmatprep.subr.mxu0 0.0
    %395 = vmatpush1.msra.mxu0 0.0
    %396 = vmatprep.subr.mxu0 0.0
    %397 = vmatpush1.msra.mxu0 0.0
    %398 = vmatprep.subr.mxu0 0.0
    %399 = vmatpush1.msra.mxu0 0.0
    %400 = vmatprep.subr.mxu0 0.0
    %401 = vmatpush1.msra.mxu0 0.0
    %402 = vmatprep.subr.mxu0 0.0
    %403 = vmatpush1.msra.mxu0 0.0
    %404 = vmatprep.subr.mxu0 0.0
    %405 = vmatpush1.msra.mxu0 0.0
    %406 = vmatprep.subr.mxu0 0.0
    %407 = vmatpush1.msra.mxu0 0.0
    %408 = vmatprep.subr.mxu0 0.0
    %409 = vmatpush1.msra.mxu0 0.0
    %410 = vmatprep.subr.mxu0 0.0
    %411 = vmatpush1.msra.mxu0 0.0
    %412 = vmatprep.subr.mxu0 0.0
    %413 = vmatpush1.msra.mxu0 0.0
    %414 = vmatprep.subr.mxu0 0.0
    %415 = vmatpush1.msra.mxu0 0.0
    %416 = vmatprep.subr.mxu0 0.0
    %417 = vmatpush1.msra.mxu0 0.0
    %418 = vmatprep.subr.mxu0 0.0
    %419 = vmatpush1.msra.mxu0 0.0
    %420 = vmatprep.subr.mxu0 0.0
    %421 = vmatpush1.msra.mxu0 0.0
    %422 = vmatprep.subr.mxu0 0.0
    %423 = vmatpush1.msra.mxu0 0.0
    %424 = vmatprep.subr.mxu0 0.0
    %425 = vmatpush1.msra.mxu0 0.0
    %426 = vmatprep.subr.mxu0 0.0
    %427 = vmatpush1.msra.mxu0 0.0
    %428 = vmatprep.subr.mxu0 0.0
    %429 = vmatpush1.msra.mxu0 0.0
    %430 = vmatprep.subr.mxu0 0.0
    %431 = vmatpush1.msra.mxu0 0.0
    %432 = vmatprep.subr.mxu0 0.0
    %433 = vmatpush1.msra.mxu0 0.0
    %434 = vmatprep.subr.mxu0 0.0
    %435 = vmatpush1.msra.mxu0 0.0
    %436 = vmatprep.subr.mxu0 0.0
    %437 = vmatpush1.msra.mxu0 0.0
    %438 = vmatprep.mubr.f32.mxu0 0.0
    %439 = vmatmul.mubr.f32.gmra.mrb[0].mxu0 %v100
    %v440 = vpop.f32.mrb[0].mxu0
    %v441 = vadd.f32 %v61, %v440
    %v442 = vpop.f32.mrb[0].mxu0
    %v443 = vadd.f32 %v61, %v442
    %444 = vmatprep.mubr.f32.mxu0 0.0
    %445 = vmatmul.mubr.f32.gmra.mrb[0].mxu0 %v103
    %v446 = vpop.f32.mrb[0].mxu0
    %v447 = vadd.f32 %v66, %v446
    %v448 = vpop.f32.mrb[0].mxu0
    %v449 = vadd.f32 %v66, %v448
    %450 = vmatprep.mubr.f32.mxu0 0.0
    %451 = vmatmul.mubr.f32.gmra.mrb[0].mxu0 %v106
    %v452 = vpop.f32.mrb[0].mxu0
    %v453 = vadd.f32 %v71, %v452
    %v454 = vpop.f32.mrb[0].mxu0
    %v455 = vadd.f32 %v71, %v454
    %456 = vmatprep.mubr.f32.mxu0 0.0
    %457 = vmatmul.mubr.f32.gmra.mrb[0].mxu0 %v109
    %v458 = vpop.f32.mrb[0].mxu0
    %v459 = vadd.f32 %v76, %v458
    %v460 = vpop.f32.mrb[0].mxu0
    %v461 = vadd.f32 %v76, %v460
    %462 = vmatprep.mubr.f32.mxu0 0.0
    %463 = vmatmul.mubr.f32.gmra.mrb[0].mxu0 %v112
    %v464 = vpop.f32.mrb[0].mxu0
    %v465 = vadd.f32 %v81, %v464
    %v466 = vpop.f32.mrb[0].mxu0
    %v467 = vadd.f32 %v81, %v466
    %468 = vmatprep.mubr.f32.mxu0 0.0
    %469 = vmatmul.mubr.f32.gmra.mrb[0].mxu0 %v115
    %v470 = vpop.f32.mrb[0].mxu0
    %v471 = vadd.f32 %v86, %v470
    %v472 = vpop.f32.mrb[0].mxu0
    %v473 = vadd.f32 %v86, %v472
    %474 = vmatprep.mubr.f32.mxu0 0.0
    %475 = vmatmul.mubr.f32.gmra.mrb[0].mxu0 %v118
    %v476 = vpop.f32.mrb[0].mxu0
    %v477 = vadd.f32 %v91, %v476
    %v478 = vpop.f32.mrb[0].mxu0
    %v479 = vadd.f32 %v91, %v478
    %480 = vmatprep.mubr.f32.mxu0 0.0
    %481 = vmatmul.mubr.f32.gmra.mrb[0].mxu0 %v121
    %v482 = vpop.f32.mrb[0].mxu0
    %v483 = vadd.f32 %v96, %v482
    %v484 = vpop.f32.mrb[0].mxu0
    %v485 = vadd.f32 %v96, %v484
    %486 = vdwg.mxu0
    %487 = vmatprep.subr.mxu0 %v33
    %488 = vmatpush1.msra.mxu0 %v32
    %489 = vmatprep.subr.mxu0 %v146
    %490 = vmatpush1.msra.mxu0 %v143
    %491 = vmatprep.subr.mxu0 0.0
    %492 = vmatpush1.msra.mxu0 0.0
    %493 = vmatprep.subr.mxu0 0.0
    %494 = vmatpush1.msra.mxu0 0.0
    %495 = vmatprep.subr.mxu0 0.0
    %496 = vmatpush1.msra.mxu0 0.0
    %497 = vmatprep.subr.mxu0 0.0
    %498 = vmatpush1.msra.mxu0 0.0
    %499 = vmatprep.subr.mxu0 0.0
    %500 = vmatpush1.msra.mxu0 0.0
    %501 = vmatprep.subr.mxu0 0.0
    %502 = vmatpush1.msra.mxu0 0.0
    %503 = vmatprep.subr.mxu0 0.0
    %504 = vmatpush1.msra.mxu0 0.0
    %505 = vmatprep.subr.mxu0 0.0
    %506 = vmatpush1.msra.mxu0 0.0
    %507 = vmatprep.subr.mxu0 0.0
    %508 = vmatpush1.msra.mxu0 0.0
    %509 = vmatprep.subr.mxu0 0.0
    %510 = vmatpush1.msra.mxu0 0.0
    %511 = vmatprep.subr.mxu0 0.0
    %512 = vmatpush1.msra.mxu0 0.0
    %513 = vmatprep.subr.mxu0 0.0
    %514 = vmatpush1.msra.mxu0 0.0
    %515 = vmatprep.subr.mxu0 0.0
    %516 = vmatpush1.msra.mxu0 0.0
    %517 = vmatprep.subr.mxu0 0.0
    %518 = vmatpush1.msra.mxu0 0.0
    %519 = vmatprep.subr.mxu0 0.0
    %520 = vmatpush1.msra.mxu0 0.0
    %521 = vmatprep.subr.mxu0 0.0
    %522 = vmatpush1.msra.mxu0 0.0
    %523 = vmatprep.subr.mxu0 0.0
    %524 = vmatpush1.msra.mxu0 0.0
    %525 = vmatprep.subr.mxu0 0.0
    %526 = vmatpush1.msra.mxu0 0.0
    %527 = vmatprep.subr.mxu0 0.0
    %528 = vmatpush1.msra.mxu0 0.0
    %529 = vmatprep.subr.mxu0 0.0
    %530 = vmatpush1.msra.mxu0 0.0
    %531 = vmatprep.subr.mxu0 0.0
    %532 = vmatpush1.msra.mxu0 0.0
    %533 = vmatprep.subr.mxu0 0.0
    %534 = vmatpush1.msra.mxu0 0.0
    %535 = vmatprep.subr.mxu0 0.0
    %536 = vmatpush1.msra.mxu0 0.0
    %537 = vmatprep.subr.mxu0 0.0
    %538 = vmatpush1.msra.mxu0 0.0
    %539 = vmatprep.subr.mxu0 0.0
    %540 = vmatpush1.msra.mxu0 0.0
    %541 = vmatprep.subr.mxu0 0.0
    %542 = vmatpush1.msra.mxu0 0.0
    %543 = vmatprep.subr.mxu0 0.0
    %544 = vmatpush1.msra.mxu0 0.0
    %545 = vmatprep.subr.mxu0 0.0
    %546 = vmatpush1.msra.mxu0 0.0
    %547 = vmatprep.subr.mxu0 0.0
    %548 = vmatpush1.msra.mxu0 0.0
    %549 = vmatprep.subr.mxu0 0.0
    %550 = vmatpush1.msra.mxu0 0.0
    %551 = vmatprep.mubr.f32.mxu0 0.0
    %552 = vmatmul.mubr.f32.gmra.mrb[0].mxu0 %v100
    %v553 = vpop.f32.mrb[0].mxu0
    %v554 = vadd.f32 %v61, %v553
    %v555 = vpop.f32.mrb[0].mxu0
    %v556 = vadd.f32 %v61, %v555
    %557 = vmatprep.mubr.f32.mxu0 0.0
    %558 = vmatmul.mubr.f32.gmra.mrb[0].mxu0 %v103
    %v559 = vpop.f32.mrb[0].mxu0
    %v560 = vadd.f32 %v66, %v559
    %v561 = vpop.f32.mrb[0].mxu0
    %v562 = vadd.f32 %v66, %v561
    %563 = vmatprep.mubr.f32.mxu0 0.0
    %564 = vmatmul.mubr.f32.gmra.mrb[0].mxu0 %v106
    %v565 = vpop.f32.mrb[0].mxu0
    %v566 = vadd.f32 %v71, %v565
    %v567 = vpop.f32.mrb[0].mxu0
    %v568 = vadd.f32 %v71, %v567
    %569 = vmatprep.mubr.f32.mxu0 0.0
    %570 = vmatmul.mubr.f32.gmra.mrb[0].mxu0 %v109
    %v571 = vpop.f32.mrb[0].mxu0
    %v572 = vadd.f32 %v76, %v571
    %v573 = vpop.f32.mrb[0].mxu0
    %v574 = vadd.f32 %v76, %v573
    %575 = vmatprep.mubr.f32.mxu0 0.0
    %576 = vmatmul.mubr.f32.gmra.mrb[0].mxu0 %v112
    %v577 = vpop.f32.mrb[0].mxu0
    %v578 = vadd.f32 %v81, %v577
    %v579 = vpop.f32.mrb[0].mxu0
    %v580 = vadd.f32 %v81, %v579
    %581 = vmatprep.mubr.f32.mxu0 0.0
    %582 = vmatmul.mubr.f32.gmra.mrb[0].mxu0 %v115
    %v583 = vpop.f32.mrb[0].mxu0
    %v584 = vadd.f32 %v86, %v583
    %v585 = vpop.f32.mrb[0].mxu0
    %v586 = vadd.f32 %v86, %v585
    %587 = vmatprep.mubr.f32.mxu0 0.0
    %588 = vmatmul.mubr.f32.gmra.mrb[0].mxu0 %v118
    %v589 = vpop.f32.mrb[0].mxu0
    %v590 = vadd.f32 %v91, %v589
    %v591 = vpop.f32.mrb[0].mxu0
    %v592 = vadd.f32 %v91, %v591
    %593 = vmatprep.mubr.f32.mxu0 0.0
    %594 = vmatmul.mubr.f32.gmra.mrb[0].mxu0 %v121
    %v595 = vpop.f32.mrb[0].mxu0
    %v596 = vadd.f32 %v96, %v595
    %v597 = vpop.f32.mrb[0].mxu0
    %v598 = vadd.f32 %v96, %v597
    %599 = vdwg.mxu0
    %v600 = vmax.f32 %v215, 0.0
    %v601 = vmax.f32 %v217, 0.0
    %v602 = vmax.f32 %v328, 0.0
    %v603 = vmax.f32 %v330, 0.0
    %v604 = vmax.f32 %v441, 0.0
    %v605 = vmax.f32 %v443, 0.0
    %v606 = vmax.f32 %v554, 0.0
    %v607 = vmax.f32 %v556, 0.0
    %v608 = vmax.f32 %v221, 0.0
    %v609 = vmax.f32 %v223, 0.0
    %v610 = vmax.f32 %v334, 0.0
    %v611 = vmax.f32 %v336, 0.0
    %v612 = vmax.f32 %v447, 0.0
    %v613 = vmax.f32 %v449, 0.0
    %v614 = vmax.f32 %v560, 0.0
    %v615 = vmax.f32 %v562, 0.0
    %v616 = vmax.f32 %v227, 0.0
    %v617 = vmax.f32 %v229, 0.0
    %v618 = vmax.f32 %v340, 0.0
    %v619 = vmax.f32 %v342, 0.0
    %v620 = vmax.f32 %v453, 0.0
    %v621 = vmax.f32 %v455, 0.0
    %v622 = vmax.f32 %v566, 0.0
    %v623 = vmax.f32 %v568, 0.0
    %v624 = vmax.f32 %v233, 0.0
    %v625 = vmax.f32 %v235, 0.0
    %v626 = vmax.f32 %v346, 0.0
    %v627 = vmax.f32 %v348, 0.0
    %v628 = vmax.f32 %v459, 0.0
    %v629 = vmax.f32 %v461, 0.0
    %v630 = vmax.f32 %v572, 0.0
    %v631 = vmax.f32 %v574, 0.0
    %v632 = vmax.f32 %v239, 0.0
    %v633 = vmax.f32 %v241, 0.0
    %v634 = vmax.f32 %v352, 0.0
    %v635 = vmax.f32 %v354, 0.0
    %v636 = vmax.f32 %v465, 0.0
    %v637 = vmax.f32 %v467, 0.0
    %v638 = vmax.f32 %v578, 0.0
    %v639 = vmax.f32 %v580, 0.0
    %v640 = vmax.f32 %v245, 0.0
    %v641 = vmax.f32 %v247, 0.0
    %v642 = vmax.f32 %v358, 0.0
    %v643 = vmax.f32 %v360, 0.0
    %v644 = vmax.f32 %v471, 0.0
    %v645 = vmax.f32 %v473, 0.0
    %v646 = vmax.f32 %v584, 0.0
    %v647 = vmax.f32 %v586, 0.0
    %v648 = vmax.f32 %v251, 0.0
    %v649 = vmax.f32 %v253, 0.0
    %v650 = vmax.f32 %v364, 0.0
    %v651 = vmax.f32 %v366, 0.0
    %v652 = vmax.f32 %v477, 0.0
    %v653 = vmax.f32 %v479, 0.0
    %v654 = vmax.f32 %v590, 0.0
    %v655 = vmax.f32 %v592, 0.0
    %v656 = vmax.f32 %v257, 0.0
    %v657 = vmax.f32 %v259, 0.0
    %v658 = vmax.f32 %v370, 0.0
    %v659 = vmax.f32 %v372, 0.0
    %v660 = vmax.f32 %v483, 0.0
    %v661 = vmax.f32 %v485, 0.0
    %v662 = vmax.f32 %v596, 0.0
    %v663 = vmax.f32 %v598, 0.0
    %v664 = vld [vmem:[#allocation3 + $0x80] sm:$0xff]
    %v665 = vld [vmem:[#allocation3 + $0x88] sm:$0xff]
    %v666 = vld [vmem:[#allocation3 + $0x90] sm:$0xff]
    %v667 = vld [vmem:[#allocation3 + $0x98] sm:$0xff]
    %v668 = vld [vmem:[#allocation3 + $0xa0] sm:$0xff]
    %v669 = vld [vmem:[#allocation3 + $0xa8] sm:$0xff]
    %v670 = vld [vmem:[#allocation3 + $0xb0] sm:$0xff]
    %v671 = vld [vmem:[#allocation3 + $0xb8] sm:$0xff]
    %673 = vset.pattern.permute.xlu0 0
    %674 = vperm.xlu0 %673, %v668
    %v675 = vpop.permute.xlu0 %674
    %678 = vset.pattern.permute.xlu0 0
    %679 = vperm.xlu0 %678, %v669
    %v680 = vpop.permute.xlu0 %679
    %683 = vset.pattern.permute.xlu0 0
    %684 = vperm.xlu0 %683, %v670
    %v685 = vpop.permute.xlu0 %684
    %688 = vset.pattern.permute.xlu0 0
    %689 = vperm.xlu0 %688, %v671
    %v690 = vpop.permute.xlu0 %689
    %vm692 = vcmask 523264
    %v694 = vsel %vm692, %v664, 0
    %v697 = vsel %vm692, %v665, 0
    %v700 = vsel %vm692, %v666, 0
    %v703 = vsel %vm692, %v667, 0
    %705 = vmatprep.subr.mxu0 %v601
    %706 = vmatpush1.msra.mxu0 %v600
    %707 = vmatprep.subr.mxu0 %v609
    %708 = vmatpush1.msra.mxu0 %v608
    %709 = vmatprep.subr.mxu0 %v617
    %710 = vmatpush1.msra.mxu0 %v616
    %711 = vmatprep.subr.mxu0 %v625
    %712 = vmatpush1.msra.mxu0 %v624
    %713 = vmatprep.subr.mxu0 %v633
    %714 = vmatpush1.msra.mxu0 %v632
    %715 = vmatprep.subr.mxu0 %v641
    %716 = vmatpush1.msra.mxu0 %v640
    %717 = vmatprep.subr.mxu0 %v649
    %718 = vmatpush1.msra.mxu0 %v648
    %719 = vmatprep.subr.mxu0 %v657
    %720 = vmatpush1.msra.mxu0 %v656
    %721 = vmatprep.subr.mxu0 0.0
    %722 = vmatpush1.msra.mxu0 0.0
    %723 = vmatprep.subr.mxu0 0.0
    %724 = vmatpush1.msra.mxu0 0.0
    %725 = vmatprep.subr.mxu0 0.0
    %726 = vmatpush1.msra.mxu0 0.0
    %727 = vmatprep.subr.mxu0 0.0
    %728 = vmatpush1.msra.mxu0 0.0
    %729 = vmatprep.subr.mxu0 0.0
    %730 = vmatpush1.msra.mxu0 0.0
    %731 = vmatprep.subr.mxu0 0.0
    %732 = vmatpush1.msra.mxu0 0.0
    %733 = vmatprep.subr.mxu0 0.0
    %734 = vmatpush1.msra.mxu0 0.0
    %735 = vmatprep.subr.mxu0 0.0
    %736 = vmatpush1.msra.mxu0 0.0
    %737 = vmatprep.subr.mxu0 0.0
    %738 = vmatpush1.msra.mxu0 0.0
    %739 = vmatprep.subr.mxu0 0.0
    %740 = vmatpush1.msra.mxu0 0.0
    %741 = vmatprep.subr.mxu0 0.0
    %742 = vmatpush1.msra.mxu0 0.0
    %743 = vmatprep.subr.mxu0 0.0
    %744 = vmatpush1.msra.mxu0 0.0
    %745 = vmatprep.subr.mxu0 0.0
    %746 = vmatpush1.msra.mxu0 0.0
    %747 = vmatprep.subr.mxu0 0.0
    %748 = vmatpush1.msra.mxu0 0.0
    %749 = vmatprep.subr.mxu0 0.0
    %750 = vmatpush1.msra.mxu0 0.0
    %751 = vmatprep.subr.mxu0 0.0
    %752 = vmatpush1.msra.mxu0 0.0
    %753 = vmatprep.subr.mxu0 0.0
    %754 = vmatpush1.msra.mxu0 0.0
    %755 = vmatprep.subr.mxu0 0.0
    %756 = vmatpush1.msra.mxu0 0.0
    %757 = vmatprep.subr.mxu0 0.0
    %758 = vmatpush1.msra.mxu0 0.0
    %759 = vmatprep.subr.mxu0 0.0
    %760 = vmatpush1.msra.mxu0 0.0
    %761 = vmatprep.subr.mxu0 0.0
    %762 = vmatpush1.msra.mxu0 0.0
    %763 = vmatprep.subr.mxu0 0.0
    %764 = vmatpush1.msra.mxu0 0.0
    %765 = vmatprep.subr.mxu0 0.0
    %766 = vmatpush1.msra.mxu0 0.0
    %767 = vmatprep.subr.mxu0 0.0
    %768 = vmatpush1.msra.mxu0 0.0
    %769 = vmatprep.mubr.f32.mxu0 0.0
    %770 = vmatmul.mubr.f32.gmra.mrb[0].mxu0 %v694
    %v771 = vpop.f32.mrb[0].mxu0
    %v772 = vadd.f32 %v675, %v771
    %v773 = vpop.f32.mrb[0].mxu0
    %v774 = vadd.f32 %v675, %v773
    %775 = vmatprep.mubr.f32.mxu0 0.0
    %776 = vmatmul.mubr.f32.gmra.mrb[0].mxu0 %v697
    %v777 = vpop.f32.mrb[0].mxu0
    %v778 = vadd.f32 %v680, %v777
    %v779 = vpop.f32.mrb[0].mxu0
    %v780 = vadd.f32 %v680, %v779
    %781 = vmatprep.mubr.f32.mxu0 0.0
    %782 = vmatmul.mubr.f32.gmra.mrb[0].mxu0 %v700
    %v783 = vpop.f32.mrb[0].mxu0
    %v784 = vadd.f32 %v685, %v783
    %v785 = vpop.f32.mrb[0].mxu0
    %v786 = vadd.f32 %v685, %v785
    %787 = vmatprep.mubr.f32.mxu0 0.0
    %788 = vmatmul.mubr.f32.gmra.mrb[0].mxu0 %v703
    %v789 = vpop.f32.mrb[0].mxu0
    %v790 = vadd.f32 %v690, %v789
    %v791 = vpop.f32.mrb[0].mxu0
    %v792 = vadd.f32 %v690, %v791
    %793 = vdwg.mxu0
    %794 = vmatprep.subr.mxu0 %v603
    %795 = vmatpush1.msra.mxu0 %v602
    %796 = vmatprep.subr.mxu0 %v611
    %797 = vmatpush1.msra.mxu0 %v610
    %798 = vmatprep.subr.mxu0 %v619
    %799 = vmatpush1.msra.mxu0 %v618
    %800 = vmatprep.subr.mxu0 %v627
    %801 = vmatpush1.msra.mxu0 %v626
    %802 = vmatprep.subr.mxu0 %v635
    %803 = vmatpush1.msra.mxu0 %v634
    %804 = vmatprep.subr.mxu0 %v643
    %805 = vmatpush1.msra.mxu0 %v642
    %806 = vmatprep.subr.mxu0 %v651
    %807 = vmatpush1.msra.mxu0 %v650
    %808 = vmatprep.subr.mxu0 %v659
    %809 = vmatpush1.msra.mxu0 %v658
    %810 = vmatprep.subr.mxu0 0.0
    %811 = vmatpush1.msra.mxu0 0.0
    %812 = vmatprep.subr.mxu0 0.0
    %813 = vmatpush1.msra.mxu0 0.0
    %814 = vmatprep.subr.mxu0 0.0
    %815 = vmatpush1.msra.mxu0 0.0
    %816 = vmatprep.subr.mxu0 0.0
    %817 = vmatpush1.msra.mxu0 0.0
    %818 = vmatprep.subr.mxu0 0.0
    %819 = vmatpush1.msra.mxu0 0.0
    %820 = vmatprep.subr.mxu0 0.0
    %821 = vmatpush1.msra.mxu0 0.0
    %822 = vmatprep.subr.mxu0 0.0
    %823 = vmatpush1.msra.mxu0 0.0
    %824 = vmatprep.subr.mxu0 0.0
    %825 = vmatpush1.msra.mxu0 0.0
    %826 = vmatprep.subr.mxu0 0.0
    %827 = vmatpush1.msra.mxu0 0.0
    %828 = vmatprep.subr.mxu0 0.0
    %829 = vmatpush1.msra.mxu0 0.0
    %830 = vmatprep.subr.mxu0 0.0
    %831 = vmatpush1.msra.mxu0 0.0
    %832 = vmatprep.subr.mxu0 0.0
    %833 = vmatpush1.msra.mxu0 0.0
    %834 = vmatprep.subr.mxu0 0.0
    %835 = vmatpush1.msra.mxu0 0.0
    %836 = vmatprep.subr.mxu0 0.0
    %837 = vmatpush1.msra.mxu0 0.0
    %838 = vmatprep.subr.mxu0 0.0
    %839 = vmatpush1.msra.mxu0 0.0
    %840 = vmatprep.subr.mxu0 0.0
    %841 = vmatpush1.msra.mxu0 0.0
    %842 = vmatprep.subr.mxu0 0.0
    %843 = vmatpush1.msra.mxu0 0.0
    %844 = vmatprep.subr.mxu0 0.0
    %845 = vmatpush1.msra.mxu0 0.0
    %846 = vmatprep.subr.mxu0 0.0
    %847 = vmatpush1.msra.mxu0 0.0
    %848 = vmatprep.subr.mxu0 0.0
    %849 = vmatpush1.msra.mxu0 0.0
    %850 = vmatprep.subr.mxu0 0.0
    %851 = vmatpush1.msra.mxu0 0.0
    %852 = vmatprep.subr.mxu0 0.0
    %853 = vmatpush1.msra.mxu0 0.0
    %854 = vmatprep.subr.mxu0 0.0
    %855 = vmatpush1.msra.mxu0 0.0
    %856 = vmatprep.subr.mxu0 0.0
    %857 = vmatpush1.msra.mxu0 0.0
    %858 = vmatprep.mubr.f32.mxu0 0.0
    %859 = vmatmul.mubr.f32.gmra.mrb[0].mxu0 %v694
    %v860 = vpop.f32.mrb[0].mxu0
    %v861 = vadd.f32 %v675, %v860
    %v862 = vpop.f32.mrb[0].mxu0
    %v863 = vadd.f32 %v675, %v862
    %864 = vmatprep.mubr.f32.mxu0 0.0
    %865 = vmatmul.mubr.f32.gmra.mrb[0].mxu0 %v697
    %v866 = vpop.f32.mrb[0].mxu0
    %v867 = vadd.f32 %v680, %v866
    %v868 = vpop.f32.mrb[0].mxu0
    %v869 = vadd.f32 %v680, %v868
    %870 = vmatprep.mubr.f32.mxu0 0.0
    %871 = vmatmul.mubr.f32.gmra.mrb[0].mxu0 %v700
    %v872 = vpop.f32.mrb[0].mxu0
    %v873 = vadd.f32 %v685, %v872
    %v874 = vpop.f32.mrb[0].mxu0
    %v875 = vadd.f32 %v685, %v874
    %876 = vmatprep.mubr.f32.mxu0 0.0
    %877 = vmatmul.mubr.f32.gmra.mrb[0].mxu0 %v703
    %v878 = vpop.f32.mrb[0].mxu0
    %v879 = vadd.f32 %v690, %v878
    %v880 = vpop.f32.mrb[0].mxu0
    %v881 = vadd.f32 %v690, %v880
    %882 = vdwg.mxu0
    %883 = vmatprep.subr.mxu0 %v605
    %884 = vmatpush1.msra.mxu0 %v604
    %885 = vmatprep.subr.mxu0 %v613
    %886 = vmatpush1.msra.mxu0 %v612
    %887 = vmatprep.subr.mxu0 %v621
    %888 = vmatpush1.msra.mxu0 %v620
    %889 = vmatprep.subr.mxu0 %v629
    %890 = vmatpush1.msra.mxu0 %v628
    %891 = vmatprep.subr.mxu0 %v637
    %892 = vmatpush1.msra.mxu0 %v636
    %893 = vmatprep.subr.mxu0 %v645
    %894 = vmatpush1.msra.mxu0 %v644
    %895 = vmatprep.subr.mxu0 %v653
    %896 = vmatpush1.msra.mxu0 %v652
    %897 = vmatprep.subr.mxu0 %v661
    %898 = vmatpush1.msra.mxu0 %v660
    %899 = vmatprep.subr.mxu0 0.0
    %900 = vmatpush1.msra.mxu0 0.0
    %901 = vmatprep.subr.mxu0 0.0
    %902 = vmatpush1.msra.mxu0 0.0
    %903 = vmatprep.subr.mxu0 0.0
    %904 = vmatpush1.msra.mxu0 0.0
    %905 = vmatprep.subr.mxu0 0.0
    %906 = vmatpush1.msra.mxu0 0.0
    %907 = vmatprep.subr.mxu0 0.0
    %908 = vmatpush1.msra.mxu0 0.0
    %909 = vmatprep.subr.mxu0 0.0
    %910 = vmatpush1.msra.mxu0 0.0
    %911 = vmatprep.subr.mxu0 0.0
    %912 = vmatpush1.msra.mxu0 0.0
    %913 = vmatprep.subr.mxu0 0.0
    %914 = vmatpush1.msra.mxu0 0.0
    %915 = vmatprep.subr.mxu0 0.0
    %916 = vmatpush1.msra.mxu0 0.0
    %917 = vmatprep.subr.mxu0 0.0
    %918 = vmatpush1.msra.mxu0 0.0
    %919 = vmatprep.subr.mxu0 0.0
    %920 = vmatpush1.msra.mxu0 0.0
    %921 = vmatprep.subr.mxu0 0.0
    %922 = vmatpush1.msra.mxu0 0.0
    %923 = vmatprep.subr.mxu0 0.0
    %924 = vmatpush1.msra.mxu0 0.0
    %925 = vmatprep.subr.mxu0 0.0
    %926 = vmatpush1.msra.mxu0 0.0
    %927 = vmatprep.subr.mxu0 0.0
    %928 = vmatpush1.msra.mxu0 0.0
    %929 = vmatprep.subr.mxu0 0.0
    %930 = vmatpush1.msra.mxu0 0.0
    %931 = vmatprep.subr.mxu0 0.0
    %932 = vmatpush1.msra.mxu0 0.0
    %933 = vmatprep.subr.mxu0 0.0
    %934 = vmatpush1.msra.mxu0 0.0
    %935 = vmatprep.subr.mxu0 0.0
    %936 = vmatpush1.msra.mxu0 0.0
    %937 = vmatprep.subr.mxu0 0.0
    %938 = vmatpush1.msra.mxu0 0.0
    %939 = vmatprep.subr.mxu0 0.0
    %940 = vmatpush1.msra.mxu0 0.0
    %941 = vmatprep.subr.mxu0 0.0
    %942 = vmatpush1.msra.mxu0 0.0
    %943 = vmatprep.subr.mxu0 0.0
    %944 = vmatpush1.msra.mxu0 0.0
    %945 = vmatprep.subr.mxu0 0.0
    %946 = vmatpush1.msra.mxu0 0.0
    %947 = vmatprep.mubr.f32.mxu0 0.0
    %948 = vmatmul.mubr.f32.gmra.mrb[0].mxu0 %v694
    %v949 = vpop.f32.mrb[0].mxu0
    %v950 = vadd.f32 %v675, %v949
    %v951 = vpop.f32.mrb[0].mxu0
    %v952 = vadd.f32 %v675, %v951
    %953 = vmatprep.mubr.f32.mxu0 0.0
    %954 = vmatmul.mubr.f32.gmra.mrb[0].mxu0 %v697
    %v955 = vpop.f32.mrb[0].mxu0
    %v956 = vadd.f32 %v680, %v955
    %v957 = vpop.f32.mrb[0].mxu0
    %v958 = vadd.f32 %v680, %v957
    %959 = vmatprep.mubr.f32.mxu0 0.0
    %960 = vmatmul.mubr.f32.gmra.mrb[0].mxu0 %v700
    %v961 = vpop.f32.mrb[0].mxu0
    %v962 = vadd.f32 %v685, %v961
    %v963 = vpop.f32.mrb[0].mxu0
    %v964 = vadd.f32 %v685, %v963
    %965 = vmatprep.mubr.f32.mxu0 0.0
    %966 = vmatmul.mubr.f32.gmra.mrb[0].mxu0 %v703
    %v967 = vpop.f32.mrb[0].mxu0
    %v968 = vadd.f32 %v690, %v967
    %v969 = vpop.f32.mrb[0].mxu0
    %v970 = vadd.f32 %v690, %v969
    %971 = vdwg.mxu0
    %972 = vmatprep.subr.mxu0 %v607
    %973 = vmatpush1.msra.mxu0 %v606
    %974 = vmatprep.subr.mxu0 %v615
    %975 = vmatpush1.msra.mxu0 %v614
    %976 = vmatprep.subr.mxu0 %v623
    %977 = vmatpush1.msra.mxu0 %v622
    %978 = vmatprep.subr.mxu0 %v631
    %979 = vmatpush1.msra.mxu0 %v630
    %980 = vmatprep.subr.mxu0 %v639
    %981 = vmatpush1.msra.mxu0 %v638
    %982 = vmatprep.subr.mxu0 %v647
    %983 = vmatpush1.msra.mxu0 %v646
    %984 = vmatprep.subr.mxu0 %v655
    %985 = vmatpush1.msra.mxu0 %v654
    %986 = vmatprep.subr.mxu0 %v663
    %987 = vmatpush1.msra.mxu0 %v662
    %988 = vmatprep.subr.mxu0 0.0
    %989 = vmatpush1.msra.mxu0 0.0
    %990 = vmatprep.subr.mxu0 0.0
    %991 = vmatpush1.msra.mxu0 0.0
    %992 = vmatprep.subr.mxu0 0.0
    %993 = vmatpush1.msra.mxu0 0.0
    %994 = vmatprep.subr.mxu0 0.0
    %995 = vmatpush1.msra.mxu0 0.0
    %996 = vmatprep.subr.mxu0 0.0
    %997 = vmatpush1.msra.mxu0 0.0
    %998 = vmatprep.subr.mxu0 0.0
    %999 = vmatpush1.msra.mxu0 0.0
    %1000 = vmatprep.subr.mxu0 0.0
    %1001 = vmatpush1.msra.mxu0 0.0
    %1002 = vmatprep.subr.mxu0 0.0
    %1003 = vmatpush1.msra.mxu0 0.0
    %1004 = vmatprep.subr.mxu0 0.0
    %1005 = vmatpush1.msra.mxu0 0.0
    %1006 = vmatprep.subr.mxu0 0.0
    %1007 = vmatpush1.msra.mxu0 0.0
    %1008 = vmatprep.subr.mxu0 0.0
    %1009 = vmatpush1.msra.mxu0 0.0
    %1010 = vmatprep.subr.mxu0 0.0
    %1011 = vmatpush1.msra.mxu0 0.0
    %1012 = vmatprep.subr.mxu0 0.0
    %1013 = vmatpush1.msra.mxu0 0.0
    %1014 = vmatprep.subr.mxu0 0.0
    %1015 = vmatpush1.msra.mxu0 0.0
    %1016 = vmatprep.subr.mxu0 0.0
    %1017 = vmatpush1.msra.mxu0 0.0
    %1018 = vmatprep.subr.mxu0 0.0
    %1019 = vmatpush1.msra.mxu0 0.0
    %1020 = vmatprep.subr.mxu0 0.0
    %1021 = vmatpush1.msra.mxu0 0.0
    %1022 = vmatprep.subr.mxu0 0.0
    %1023 = vmatpush1.msra.mxu0 0.0
    %1024 = vmatprep.subr.mxu0 0.0
    %1025 = vmatpush1.msra.mxu0 0.0
    %1026 = vmatprep.subr.mxu0 0.0
    %1027 = vmatpush1.msra.mxu0 0.0
    %1028 = vmatprep.subr.mxu0 0.0
    %1029 = vmatpush1.msra.mxu0 0.0
    %1030 = vmatprep.subr.mxu0 0.0
    %1031 = vmatpush1.msra.mxu0 0.0
    %1032 = vmatprep.subr.mxu0 0.0
    %1033 = vmatpush1.msra.mxu0 0.0
    %1034 = vmatprep.subr.mxu0 0.0
    %1035 = vmatpush1.msra.mxu0 0.0
    %1036 = vmatprep.mubr.f32.mxu0 0.0
    %1037 = vmatmul.mubr.f32.gmra.mrb[0].mxu0 %v694
    %v1038 = vpop.f32.mrb[0].mxu0
    %v1039 = vadd.f32 %v675, %v1038
    %v1040 = vpop.f32.mrb[0].mxu0
    %v1041 = vadd.f32 %v675, %v1040
    %1042 = vmatprep.mubr.f32.mxu0 0.0
    %1043 = vmatmul.mubr.f32.gmra.mrb[0].mxu0 %v697
    %v1044 = vpop.f32.mrb[0].mxu0
    %v1045 = vadd.f32 %v680, %v1044
    %v1046 = vpop.f32.mrb[0].mxu0
    %v1047 = vadd.f32 %v680, %v1046
    %1048 = vmatprep.mubr.f32.mxu0 0.0
    %1049 = vmatmul.mubr.f32.gmra.mrb[0].mxu0 %v700
    %v1050 = vpop.f32.mrb[0].mxu0
    %v1051 = vadd.f32 %v685, %v1050
    %v1052 = vpop.f32.mrb[0].mxu0
    %v1053 = vadd.f32 %v685, %v1052
    %1054 = vmatprep.mubr.f32.mxu0 0.0
    %1055 = vmatmul.mubr.f32.gmra.mrb[0].mxu0 %v703
    %v1056 = vpop.f32.mrb[0].mxu0
    %v1057 = vadd.f32 %v690, %v1056
    %v1058 = vpop.f32.mrb[0].mxu0
    %v1059 = vadd.f32 %v690, %v1058
    %1060 = vdwg.mxu0
    %1061 = vst [vmem:[#allocation2] sm:$0xff] %v772
    %1062 = vst [vmem:[#allocation2 + $0x8] sm:$0xff] %v774
    %1063 = vst [vmem:[#allocation2 + $0x10] sm:$0xff] %v861
    %1064 = vst [vmem:[#allocation2 + $0x18] sm:$0xff] %v863
    %1065 = vst [vmem:[#allocation2 + $0x20] sm:$0xff] %v950
    %1066 = vst [vmem:[#allocation2 + $0x28] sm:$0xff] %v952
    %1067 = vst [vmem:[#allocation2 + $0x30] sm:$0xff] %v1039
    %1068 = vst [vmem:[#allocation2 + $0x38] sm:$0xff] %v1041
    %1069 = vst [vmem:[#allocation2 + $0x40] sm:$0xff] %v778
    %1070 = vst [vmem:[#allocation2 + $0x48] sm:$0xff] %v780
    %1071 = vst [vmem:[#allocation2 + $0x50] sm:$0xff] %v867
    %1072 = vst [vmem:[#allocation2 + $0x58] sm:$0xff] %v869
    %1073 = vst [vmem:[#allocation2 + $0x60] sm:$0xff] %v956
    %1074 = vst [vmem:[#allocation2 + $0x68] sm:$0xff] %v958
    %1075 = vst [vmem:[#allocation2 + $0x70] sm:$0xff] %v1045
    %1076 = vst [vmem:[#allocation2 + $0x78] sm:$0xff] %v1047
    %1077 = vst [vmem:[#allocation2 + $0x80] sm:$0xff] %v784
    %1078 = vst [vmem:[#allocation2 + $0x88] sm:$0xff] %v786
    %1079 = vst [vmem:[#allocation2 + $0x90] sm:$0xff] %v873
    %1080 = vst [vmem:[#allocation2 + $0x98] sm:$0xff] %v875
    %1081 = vst [vmem:[#allocation2 + $0xa0] sm:$0xff] %v962
    %1082 = vst [vmem:[#allocation2 + $0xa8] sm:$0xff] %v964
    %1083 = vst [vmem:[#allocation2 + $0xb0] sm:$0xff] %v1051
    %1084 = vst [vmem:[#allocation2 + $0xb8] sm:$0xff] %v1053
    %1085 = vst [vmem:[#allocation2 + $0xc0] sm:$0xff] %v790
    %1086 = vst [vmem:[#allocation2 + $0xc8] sm:$0xff] %v792
    %1087 = vst [vmem:[#allocation2 + $0xd0] sm:$0xff] %v879
    %1088 = vst [vmem:[#allocation2 + $0xd8] sm:$0xff] %v881
    %1089 = vst [vmem:[#allocation2 + $0xe0] sm:$0xff] %v968
    %1090 = vst [vmem:[#allocation2 + $0xe8] sm:$0xff] %v970
    %1091 = vst [vmem:[#allocation2 + $0xf0] sm:$0xff] %v1057
    %1092 = vst [vmem:[#allocation2 + $0xf8] sm:$0xff] %v1059
    %v1093 = vld [vmem:[#allocation3 + $0xc0] sm:$0xff]
    %v1094 = vld [vmem:[#allocation3 + $0xc8] sm:$0xff]
    %v1095 = vld [vmem:[#allocation3 + $0xd0] sm:$0xff]
    %v1096 = vld [vmem:[#allocation3 + $0xd8] sm:$0xff]
    %v1097 = vld [vmem:[#allocation2] sm:$0xff]
    %v1098 = vld [vmem:[#allocation2 + $0x40] sm:$0xff]
    %v1099 = vld [vmem:[#allocation2 + $0x80] sm:$0xff]
    %v1100 = vld [vmem:[#allocation2 + $0xc0] sm:$0xff]
    %vm1101 = vcmask 261120
    %v1103 = vsel %vm1101, %v1093, 0
    %v1106 = vsel %vm1101, %v1094, 0
    %v1109 = vsel %vm1101, %v1095, 0
    %v1112 = vsel %vm1101, %v1096, 0
    %1114 = vmatprep.subr.mxu0 0.0
    %1115 = vmatpush1.msra.mxu0 0.0
    %1116 = vmatprep.subr.mxu0 0.0
    %1117 = vmatpush1.msra.mxu0 0.0
    %1118 = vmatprep.subr.mxu0 0.0
    %1119 = vmatpush1.msra.mxu0 0.0
    %1120 = vmatprep.subr.mxu0 0.0
    %1121 = vmatpush1.msra.mxu0 0.0
    %1122 = vmatprep.subr.mxu0 0.0
    %1123 = vmatpush1.msra.mxu0 0.0
    %1124 = vmatprep.subr.mxu0 0.0
    %1125 = vmatpush1.msra.mxu0 0.0
    %1126 = vmatprep.subr.mxu0 0.0
    %1127 = vmatpush1.msra.mxu0 0.0
    %1128 = vmatprep.subr.mxu0 0.0
    %1129 = vmatpush1.msra.mxu0 0.0
    %1130 = vmatprep.subr.mxu0 0.0
    %1131 = vmatpush1.msra.mxu0 0.0
    %1132 = vmatprep.subr.mxu0 0.0
    %1133 = vmatpush1.msra.mxu0 0.0
    %1134 = vmatprep.subr.mxu0 0.0
    %1135 = vmatpush1.msra.mxu0 0.0
    %1136 = vmatprep.subr.mxu0 0.0
    %1137 = vmatpush1.msra.mxu0 0.0
    %1138 = vmatprep.subr.mxu0 0.0
    %1139 = vmatpush1.msra.mxu0 0.0
    %1140 = vmatprep.subr.mxu0 0.0
    %1141 = vmatpush1.msra.mxu0 0.0
    %1142 = vmatprep.subr.mxu0 0.0
    %1143 = vmatpush1.msra.mxu0 0.0
    %1144 = vmatprep.subr.mxu0 0.0
    %1145 = vmatpush1.msra.mxu0 0.0
    %1146 = vmatprep.subr.mxu0 0.0
    %1147 = vmatpush1.msra.mxu0 0.0
    %1148 = vmatprep.subr.mxu0 0.0
    %1149 = vmatpush1.msra.mxu0 0.0
    %1150 = vmatprep.subr.mxu0 0.0
    %1151 = vmatpush1.msra.mxu0 0.0
    %1152 = vmatprep.subr.mxu0 0.0
    %1153 = vmatpush1.msra.mxu0 0.0
    %1154 = vmatprep.subr.mxu0 0.0
    %1155 = vmatpush1.msra.mxu0 0.0
    %1156 = vmatprep.subr.mxu0 0.0
    %1157 = vmatpush1.msra.mxu0 0.0
    %1158 = vmatprep.subr.mxu0 0.0
    %1159 = vmatpush1.msra.mxu0 0.0
    %1160 = vmatprep.subr.mxu0 0.0
    %1161 = vmatpush1.msra.mxu0 0.0
    %1162 = vmatprep.subr.mxu0 0.0
    %1163 = vmatpush1.msra.mxu0 0.0
    %1164 = vmatprep.subr.mxu0 0.0
    %1165 = vmatpush1.msra.mxu0 0.0
    %1166 = vmatprep.subr.mxu0 0.0
    %1167 = vmatpush1.msra.mxu0 0.0
    %1168 = vmatprep.subr.mxu0 0.0
    %1169 = vmatpush1.msra.mxu0 0.0
    %1170 = vmatprep.subr.mxu0 0.0
    %1171 = vmatpush1.msra.mxu0 0.0
    %1172 = vmatprep.subr.mxu0 0.0
    %1173 = vmatpush1.msra.mxu0 0.0
    %1174 = vmatprep.subr.mxu0 0.0
    %1175 = vmatpush1.msra.mxu0 0.0
    %1176 = vmatprep.subr.mxu0 0.0
    %1177 = vmatpush1.msra.mxu0 0.0
    %1178 = vmatprep.mubr.f32.mxu0 0.0
    %1179 = vmatmul.mubr.f32.gmra.mrb[0].mxu0 %v1103
    %v1180 = vpop.f32.mrb[0].mxu0
    %v1181 = vadd.f32 0.0, %v1180
    %v1182 = vpop.f32.mrb[0].mxu0
    %1183 = vmatprep.mubr.f32.mxu0 0.0
    %1184 = vmatmul.mubr.f32.gmra.mrb[0].mxu0 %v1106
    %v1185 = vpop.f32.mrb[0].mxu0
    %v1186 = vadd.f32 0.0, %v1185
    %v1187 = vpop.f32.mrb[0].mxu0
    %1188 = vmatprep.mubr.f32.mxu0 0.0
    %1189 = vmatmul.mubr.f32.gmra.mrb[0].mxu0 %v1109
    %v1190 = vpop.f32.mrb[0].mxu0
    %v1191 = vadd.f32 0.0, %v1190
    %v1192 = vpop.f32.mrb[0].mxu0
    %1193 = vmatprep.mubr.f32.mxu0 0.0
    %1194 = vmatmul.mubr.f32.gmra.mrb[0].mxu0 %v1112
    %v1195 = vpop.f32.mrb[0].mxu0
    %v1196 = vadd.f32 0.0, %v1195
    %v1197 = vpop.f32.mrb[0].mxu0
    %1198 = vdwg.mxu0
    %v1199 = vadd.f32 %v1097, %v1181
    %v1200 = vadd.f32 %v1098, %v1186
    %v1201 = vadd.f32 %v1099, %v1191
    %v1202 = vadd.f32 %v1100, %v1196
    %v1203 = vtanh.pop %v1199
    %v1204 = vtanh.pop %v1200
    %v1205 = vtanh.pop %v1201
    %v1206 = vtanh.pop %v1202
    %v1207 = vld [vmem:[#allocation2 + $0x8] sm:$0xff]
    %v1208 = vld [vmem:[#allocation2 + $0x48] sm:$0xff]
    %v1209 = vld [vmem:[#allocation2 + $0x88] sm:$0xff]
    %v1210 = vld [vmem:[#allocation2 + $0xc8] sm:$0xff]
    %1211 = vmatprep.subr.mxu0 0.0
    %1212 = vmatpush1.msra.mxu0 %v1203
    %1213 = vmatprep.subr.mxu0 0.0
    %1214 = vmatpush1.msra.mxu0 %v1204
    %1215 = vmatprep.subr.mxu0 0.0
    %1216 = vmatpush1.msra.mxu0 %v1205
    %1217 = vmatprep.subr.mxu0 0.0
    %1218 = vmatpush1.msra.mxu0 %v1206
    %1219 = vmatprep.subr.mxu0 0.0
    %1220 = vmatpush1.msra.mxu0 0.0
    %1221 = vmatprep.subr.mxu0 0.0
    %1222 = vmatpush1.msra.mxu0 0.0
    %1223 = vmatprep.subr.mxu0 0.0
    %1224 = vmatpush1.msra.mxu0 0.0
    %1225 = vmatprep.subr.mxu0 0.0
    %1226 = vmatpush1.msra.mxu0 0.0
    %1227 = vmatprep.subr.mxu0 0.0
    %1228 = vmatpush1.msra.mxu0 0.0
    %1229 = vmatprep.subr.mxu0 0.0
    %1230 = vmatpush1.msra.mxu0 0.0
    %1231 = vmatprep.subr.mxu0 0.0
    %1232 = vmatpush1.msra.mxu0 0.0
    %1233 = vmatprep.subr.mxu0 0.0
    %1234 = vmatpush1.msra.mxu0 0.0
    %1235 = vmatprep.subr.mxu0 0.0
    %1236 = vmatpush1.msra.mxu0 0.0
    %1237 = vmatprep.subr.mxu0 0.0
    %1238 = vmatpush1.msra.mxu0 0.0
    %1239 = vmatprep.subr.mxu0 0.0
    %1240 = vmatpush1.msra.mxu0 0.0
    %1241 = vmatprep.subr.mxu0 0.0
    %1242 = vmatpush1.msra.mxu0 0.0
    %1243 = vmatprep.subr.mxu0 0.0
    %1244 = vmatpush1.msra.mxu0 0.0
    %1245 = vmatprep.subr.mxu0 0.0
    %1246 = vmatpush1.msra.mxu0 0.0
    %1247 = vmatprep.subr.mxu0 0.0
    %1248 = vmatpush1.msra.mxu0 0.0
    %1249 = vmatprep.subr.mxu0 0.0
    %1250 = vmatpush1.msra.mxu0 0.0
    %1251 = vmatprep.subr.mxu0 0.0
    %1252 = vmatpush1.msra.mxu0 0.0
    %1253 = vmatprep.subr.mxu0 0.0
    %1254 = vmatpush1.msra.mxu0 0.0
    %1255 = vmatprep.subr.mxu0 0.0
    %1256 = vmatpush1.msra.mxu0 0.0
    %1257 = vmatprep.subr.mxu0 0.0
    %1258 = vmatpush1.msra.mxu0 0.0
    %1259 = vmatprep.subr.mxu0 0.0
    %1260 = vmatpush1.msra.mxu0 0.0
    %1261 = vmatprep.subr.mxu0 0.0
    %1262 = vmatpush1.msra.mxu0 0.0
    %1263 = vmatprep.subr.mxu0 0.0
    %1264 = vmatpush1.msra.mxu0 0.0
    %1265 = vmatprep.subr.mxu0 0.0
    %1266 = vmatpush1.msra.mxu0 0.0
    %1267 = vmatprep.subr.mxu0 0.0
    %1268 = vmatpush1.msra.mxu0 0.0
    %1269 = vmatprep.subr.mxu0 0.0
    %1270 = vmatpush1.msra.mxu0 0.0
    %1271 = vmatprep.subr.mxu0 0.0
    %1272 = vmatpush1.msra.mxu0 0.0
    %1273 = vmatprep.subr.mxu0 0.0
    %1274 = vmatpush1.msra.mxu0 0.0
    %1275 = vmatprep.mubr.f32.mxu0 0.0
    %1276 = vmatmul.mubr.f32.gmra.mrb[0].mxu0 %v1103
    %v1277 = vpop.f32.mrb[0].mxu0
    %v1278 = vadd.f32 0.0, %v1277
    %v1279 = vpop.f32.mrb[0].mxu0
    %1280 = vmatprep.mubr.f32.mxu0 0.0
    %1281 = vmatmul.mubr.f32.gmra.mrb[0].mxu0 %v1106
    %v1282 = vpop.f32.mrb[0].mxu0
    %v1283 = vadd.f32 0.0, %v1282
    %v1284 = vpop.f32.mrb[0].mxu0
    %1285 = vmatprep.mubr.f32.mxu0 0.0
    %1286 = vmatmul.mubr.f32.gmra.mrb[0].mxu0 %v1109
    %v1287 = vpop.f32.mrb[0].mxu0
    %v1288 = vadd.f32 0.0, %v1287
    %v1289 = vpop.f32.mrb[0].mxu0
    %1290 = vmatprep.mubr.f32.mxu0 0.0
    %1291 = vmatmul.mubr.f32.gmra.mrb[0].mxu0 %v1112
    %v1292 = vpop.f32.mrb[0].mxu0
    %v1293 = vadd.f32 0.0, %v1292
    %v1294 = vpop.f32.mrb[0].mxu0
    %1295 = vdwg.mxu0
    %v1296 = vadd.f32 %v1207, %v1278
    %v1297 = vadd.f32 %v1208, %v1283
    %v1298 = vadd.f32 %v1209, %v1288
    %v1299 = vadd.f32 %v1210, %v1293
    %v1300 = vtanh.pop %v1296
    %v1301 = vtanh.pop %v1297
    %v1302 = vtanh.pop %v1298
    %v1303 = vtanh.pop %v1299
    %v1304 = vld [vmem:[#allocation2 + $0x10] sm:$0xff]
    %v1305 = vld [vmem:[#allocation2 + $0x50] sm:$0xff]
    %v1306 = vld [vmem:[#allocation2 + $0x90] sm:$0xff]
    %v1307 = vld [vmem:[#allocation2 + $0xd0] sm:$0xff]
    %1308 = vmatprep.subr.mxu0 0.0
    %1309 = vmatpush1.msra.mxu0 %v1300
    %1310 = vmatprep.subr.mxu0 0.0
    %1311 = vmatpush1.msra.mxu0 %v1301
    %1312 = vmatprep.subr.mxu0 0.0
    %1313 = vmatpush1.msra.mxu0 %v1302
    %1314 = vmatprep.subr.mxu0 0.0
    %1315 = vmatpush1.msra.mxu0 %v1303
    %1316 = vmatprep.subr.mxu0 0.0
    %1317 = vmatpush1.msra.mxu0 0.0
    %1318 = vmatprep.subr.mxu0 0.0
    %1319 = vmatpush1.msra.mxu0 0.0
    %1320 = vmatprep.subr.mxu0 0.0
    %1321 = vmatpush1.msra.mxu0 0.0
    %1322 = vmatprep.subr.mxu0 0.0
    %1323 = vmatpush1.msra.mxu0 0.0
    %1324 = vmatprep.subr.mxu0 0.0
    %1325 = vmatpush1.msra.mxu0 0.0
    %1326 = vmatprep.subr.mxu0 0.0
    %1327 = vmatpush1.msra.mxu0 0.0
    %1328 = vmatprep.subr.mxu0 0.0
    %1329 = vmatpush1.msra.mxu0 0.0
    %1330 = vmatprep.subr.mxu0 0.0
    %1331 = vmatpush1.msra.mxu0 0.0
    %1332 = vmatprep.subr.mxu0 0.0
    %1333 = vmatpush1.msra.mxu0 0.0
    %1334 = vmatprep.subr.mxu0 0.0
    %1335 = vmatpush1.msra.mxu0 0.0
    %1336 = vmatprep.subr.mxu0 0.0
    %1337 = vmatpush1.msra.mxu0 0.0
    %1338 = vmatprep.subr.mxu0 0.0
    %1339 = vmatpush1.msra.mxu0 0.0
    %1340 = vmatprep.subr.mxu0 0.0
    %1341 = vmatpush1.msra.mxu0 0.0
    %1342 = vmatprep.subr.mxu0 0.0
    %1343 = vmatpush1.msra.mxu0 0.0
    %1344 = vmatprep.subr.mxu0 0.0
    %1345 = vmatpush1.msra.mxu0 0.0
    %1346 = vmatprep.subr.mxu0 0.0
    %1347 = vmatpush1.msra.mxu0 0.0
    %1348 = vmatprep.subr.mxu0 0.0
    %1349 = vmatpush1.msra.mxu0 0.0
    %1350 = vmatprep.subr.mxu0 0.0
    %1351 = vmatpush1.msra.mxu0 0.0
    %1352 = vmatprep.subr.mxu0 0.0
    %1353 = vmatpush1.msra.mxu0 0.0
    %1354 = vmatprep.subr.mxu0 0.0
    %1355 = vmatpush1.msra.mxu0 0.0
    %1356 = vmatprep.subr.mxu0 0.0
    %1357 = vmatpush1.msra.mxu0 0.0
    %1358 = vmatprep.subr.mxu0 0.0
    %1359 = vmatpush1.msra.mxu0 0.0
    %1360 = vmatprep.subr.mxu0 0.0
    %1361 = vmatpush1.msra.mxu0 0.0
    %1362 = vmatprep.subr.mxu0 0.0
    %1363 = vmatpush1.msra.mxu0 0.0
    %1364 = vmatprep.subr.mxu0 0.0
    %1365 = vmatpush1.msra.mxu0 0.0
    %1366 = vmatprep.subr.mxu0 0.0
    %1367 = vmatpush1.msra.mxu0 0.0
    %1368 = vmatprep.subr.mxu0 0.0
    %1369 = vmatpush1.msra.mxu0 0.0
    %1370 = vmatprep.subr.mxu0 0.0
    %1371 = vmatpush1.msra.mxu0 0.0
    %1372 = vmatprep.mubr.f32.mxu0 0.0
    %1373 = vmatmul.mubr.f32.gmra.mrb[0].mxu0 %v1103
    %v1374 = vpop.f32.mrb[0].mxu0
    %v1375 = vadd.f32 0.0, %v1374
    %v1376 = vpop.f32.mrb[0].mxu0
    %1377 = vmatprep.mubr.f32.mxu0 0.0
    %1378 = vmatmul.mubr.f32.gmra.mrb[0].mxu0 %v1106
    %v1379 = vpop.f32.mrb[0].mxu0
    %v1380 = vadd.f32 0.0, %v1379
    %v1381 = vpop.f32.mrb[0].mxu0
    %1382 = vmatprep.mubr.f32.mxu0 0.0
    %1383 = vmatmul.mubr.f32.gmra.mrb[0].mxu0 %v1109
    %v1384 = vpop.f32.mrb[0].mxu0
    %v1385 = vadd.f32 0.0, %v1384
    %v1386 = vpop.f32.mrb[0].mxu0
    %1387 = vmatprep.mubr.f32.mxu0 0.0
    %1388 = vmatmul.mubr.f32.gmra.mrb[0].mxu0 %v1112
    %v1389 = vpop.f32.mrb[0].mxu0
    %v1390 = vadd.f32 0.0, %v1389
    %v1391 = vpop.f32.mrb[0].mxu0
    %1392 = vdwg.mxu0
    %v1393 = vadd.f32 %v1304, %v1375
    %v1394 = vadd.f32 %v1305, %v1380
    %v1395 = vadd.f32 %v1306, %v1385
    %v1396 = vadd.f32 %v1307, %v1390
    %v1397 = vtanh.pop %v1393
    %v1398 = vtanh.pop %v1394
    %v1399 = vtanh.pop %v1395
    %v1400 = vtanh.pop %v1396
    %v1401 = vld [vmem:[#allocation2 + $0x18] sm:$0xff]
    %v1402 = vld [vmem:[#allocation2 + $0x58] sm:$0xff]
    %v1403 = vld [vmem:[#allocation2 + $0x98] sm:$0xff]
    %v1404 = vld [vmem:[#allocation2 + $0xd8] sm:$0xff]
    %1405 = vmatprep.subr.mxu0 0.0
    %1406 = vmatpush1.msra.mxu0 %v1397
    %1407 = vmatprep.subr.mxu0 0.0
    %1408 = vmatpush1.msra.mxu0 %v1398
    %1409 = vmatprep.subr.mxu0 0.0
    %1410 = vmatpush1.msra.mxu0 %v1399
    %1411 = vmatprep.subr.mxu0 0.0
    %1412 = vmatpush1.msra.mxu0 %v1400
    %1413 = vmatprep.subr.mxu0 0.0
    %1414 = vmatpush1.msra.mxu0 0.0
    %1415 = vmatprep.subr.mxu0 0.0
    %1416 = vmatpush1.msra.mxu0 0.0
    %1417 = vmatprep.subr.mxu0 0.0
    %1418 = vmatpush1.msra.mxu0 0.0
    %1419 = vmatprep.subr.mxu0 0.0
    %1420 = vmatpush1.msra.mxu0 0.0
    %1421 = vmatprep.subr.mxu0 0.0
    %1422 = vmatpush1.msra.mxu0 0.0
    %1423 = vmatprep.subr.mxu0 0.0
    %1424 = vmatpush1.msra.mxu0 0.0
    %1425 = vmatprep.subr.mxu0 0.0
    %1426 = vmatpush1.msra.mxu0 0.0
    %1427 = vmatprep.subr.mxu0 0.0
    %1428 = vmatpush1.msra.mxu0 0.0
    %1429 = vmatprep.subr.mxu0 0.0
    %1430 = vmatpush1.msra.mxu0 0.0
    %1431 = vmatprep.subr.mxu0 0.0
    %1432 = vmatpush1.msra.mxu0 0.0
    %1433 = vmatprep.subr.mxu0 0.0
    %1434 = vmatpush1.msra.mxu0 0.0
    %1435 = vmatprep.subr.mxu0 0.0
    %1436 = vmatpush1.msra.mxu0 0.0
    %1437 = vmatprep.subr.mxu0 0.0
    %1438 = vmatpush1.msra.mxu0 0.0
    %1439 = vmatprep.subr.mxu0 0.0
    %1440 = vmatpush1.msra.mxu0 0.0
    %1441 = vmatprep.subr.mxu0 0.0
    %1442 = vmatpush1.msra.mxu0 0.0
    %1443 = vmatprep.subr.mxu0 0.0
    %1444 = vmatpush1.msra.mxu0 0.0
    %1445 = vmatprep.subr.mxu0 0.0
    %1446 = vmatpush1.msra.mxu0 0.0
    %1447 = vmatprep.subr.mxu0 0.0
    %1448 = vmatpush1.msra.mxu0 0.0
    %1449 = vmatprep.subr.mxu0 0.0
    %1450 = vmatpush1.msra.mxu0 0.0
    %1451 = vmatprep.subr.mxu0 0.0
    %1452 = vmatpush1.msra.mxu0 0.0
    %1453 = vmatprep.subr.mxu0 0.0
    %1454 = vmatpush1.msra.mxu0 0.0
    %1455 = vmatprep.subr.mxu0 0.0
    %1456 = vmatpush1.msra.mxu0 0.0
    %1457 = vmatprep.subr.mxu0 0.0
    %1458 = vmatpush1.msra.mxu0 0.0
    %1459 = vmatprep.subr.mxu0 0.0
    %1460 = vmatpush1.msra.mxu0 0.0
    %1461 = vmatprep.subr.mxu0 0.0
    %1462 = vmatpush1.msra.mxu0 0.0
    %1463 = vmatprep.subr.mxu0 0.0
    %1464 = vmatpush1.msra.mxu0 0.0
    %1465 = vmatprep.subr.mxu0 0.0
    %1466 = vmatpush1.msra.mxu0 0.0
    %1467 = vmatprep.subr.mxu0 0.0
    %1468 = vmatpush1.msra.mxu0 0.0
    %1469 = vmatprep.mubr.f32.mxu0 0.0
    %1470 = vmatmul.mubr.f32.gmra.mrb[0].mxu0 %v1103
    %v1471 = vpop.f32.mrb[0].mxu0
    %v1472 = vadd.f32 0.0, %v1471
    %v1473 = vpop.f32.mrb[0].mxu0
    %1474 = vmatprep.mubr.f32.mxu0 0.0
    %1475 = vmatmul.mubr.f32.gmra.mrb[0].mxu0 %v1106
    %v1476 = vpop.f32.mrb[0].mxu0
    %v1477 = vadd.f32 0.0, %v1476
    %v1478 = vpop.f32.mrb[0].mxu0
    %1479 = vmatprep.mubr.f32.mxu0 0.0
    %1480 = vmatmul.mubr.f32.gmra.mrb[0].mxu0 %v1109
    %v1481 = vpop.f32.mrb[0].mxu0
    %v1482 = vadd.f32 0.0, %v1481
    %v1483 = vpop.f32.mrb[0].mxu0
    %1484 = vmatprep.mubr.f32.mxu0 0.0
    %1485 = vmatmul.mubr.f32.gmra.mrb[0].mxu0 %v1112
    %v1486 = vpop.f32.mrb[0].mxu0
    %v1487 = vadd.f32 0.0, %v1486
    %v1488 = vpop.f32.mrb[0].mxu0
    %1489 = vdwg.mxu0
    %v1490 = vadd.f32 %v1401, %v1472
    %v1491 = vadd.f32 %v1402, %v1477
    %v1492 = vadd.f32 %v1403, %v1482
    %v1493 = vadd.f32 %v1404, %v1487
    %v1494 = vtanh.pop %v1490
    %v1495 = vtanh.pop %v1491
    %v1496 = vtanh.pop %v1492
    %v1497 = vtanh.pop %v1493
    %v1498 = vld [vmem:[#allocation2 + $0x20] sm:$0xff]
    %v1499 = vld [vmem:[#allocation2 + $0x60] sm:$0xff]
    %v1500 = vld [vmem:[#allocation2 + $0xa0] sm:$0xff]
    %v1501 = vld [vmem:[#allocation2 + $0xe0] sm:$0xff]
    %1502 = vmatprep.subr.mxu0 0.0
    %1503 = vmatpush1.msra.mxu0 %v1494
    %1504 = vmatprep.subr.mxu0 0.0
    %1505 = vmatpush1.msra.mxu0 %v1495
    %1506 = vmatprep.subr.mxu0 0.0
    %1507 = vmatpush1.msra.mxu0 %v1496
    %1508 = vmatprep.subr.mxu0 0.0
    %1509 = vmatpush1.msra.mxu0 %v1497
    %1510 = vmatprep.subr.mxu0 0.0
    %1511 = vmatpush1.msra.mxu0 0.0
    %1512 = vmatprep.subr.mxu0 0.0
    %1513 = vmatpush1.msra.mxu0 0.0
    %1514 = vmatprep.subr.mxu0 0.0
    %1515 = vmatpush1.msra.mxu0 0.0
    %1516 = vmatprep.subr.mxu0 0.0
    %1517 = vmatpush1.msra.mxu0 0.0
    %1518 = vmatprep.subr.mxu0 0.0
    %1519 = vmatpush1.msra.mxu0 0.0
    %1520 = vmatprep.subr.mxu0 0.0
    %1521 = vmatpush1.msra.mxu0 0.0
    %1522 = vmatprep.subr.mxu0 0.0
    %1523 = vmatpush1.msra.mxu0 0.0
    %1524 = vmatprep.subr.mxu0 0.0
    %1525 = vmatpush1.msra.mxu0 0.0
    %1526 = vmatprep.subr.mxu0 0.0
    %1527 = vmatpush1.msra.mxu0 0.0
    %1528 = vmatprep.subr.mxu0 0.0
    %1529 = vmatpush1.msra.mxu0 0.0
    %1530 = vmatprep.subr.mxu0 0.0
    %1531 = vmatpush1.msra.mxu0 0.0
    %1532 = vmatprep.subr.mxu0 0.0
    %1533 = vmatpush1.msra.mxu0 0.0
    %1534 = vmatprep.subr.mxu0 0.0
    %1535 = vmatpush1.msra.mxu0 0.0
    %1536 = vmatprep.subr.mxu0 0.0
    %1537 = vmatpush1.msra.mxu0 0.0
    %1538 = vmatprep.subr.mxu0 0.0
    %1539 = vmatpush1.msra.mxu0 0.0
    %1540 = vmatprep.subr.mxu0 0.0
    %1541 = vmatpush1.msra.mxu0 0.0
    %1542 = vmatprep.subr.mxu0 0.0
    %1543 = vmatpush1.msra.mxu0 0.0
    %1544 = vmatprep.subr.mxu0 0.0
    %1545 = vmatpush1.msra.mxu0 0.0
    %1546 = vmatprep.subr.mxu0 0.0
    %1547 = vmatpush1.msra.mxu0 0.0
    %1548 = vmatprep.subr.mxu0 0.0
    %1549 = vmatpush1.msra.mxu0 0.0
    %1550 = vmatprep.subr.mxu0 0.0
    %1551 = vmatpush1.msra.mxu0 0.0
    %1552 = vmatprep.subr.mxu0 0.0
    %1553 = vmatpush1.msra.mxu0 0.0
    %1554 = vmatprep.subr.mxu0 0.0
    %1555 = vmatpush1.msra.mxu0 0.0
    %1556 = vmatprep.subr.mxu0 0.0
    %1557 = vmatpush1.msra.mxu0 0.0
    %1558 = vmatprep.subr.mxu0 0.0
    %1559 = vmatpush1.msra.mxu0 0.0
    %1560 = vmatprep.subr.mxu0 0.0
    %1561 = vmatpush1.msra.mxu0 0.0
    %1562 = vmatprep.subr.mxu0 0.0
    %1563 = vmatpush1.msra.mxu0 0.0
    %1564 = vmatprep.subr.mxu0 0.0
    %1565 = vmatpush1.msra.mxu0 0.0
    %1566 = vmatprep.mubr.f32.mxu0 0.0
    %1567 = vmatmul.mubr.f32.gmra.mrb[0].mxu0 %v1103
    %v1568 = vpop.f32.mrb[0].mxu0
    %v1569 = vadd.f32 0.0, %v1568
    %v1570 = vpop.f32.mrb[0].mxu0
    %1571 = vmatprep.mubr.f32.mxu0 0.0
    %1572 = vmatmul.mubr.f32.gmra.mrb[0].mxu0 %v1106
    %v1573 = vpop.f32.mrb[0].mxu0
    %v1574 = vadd.f32 0.0, %v1573
    %v1575 = vpop.f32.mrb[0].mxu0
    %1576 = vmatprep.mubr.f32.mxu0 0.0
    %1577 = vmatmul.mubr.f32.gmra.mrb[0].mxu0 %v1109
    %v1578 = vpop.f32.mrb[0].mxu0
    %v1579 = vadd.f32 0.0, %v1578
    %v1580 = vpop.f32.mrb[0].mxu0
    %1581 = vmatprep.mubr.f32.mxu0 0.0
    %1582 = vmatmul.mubr.f32.gmra.mrb[0].mxu0 %v1112
    %v1583 = vpop.f32.mrb[0].mxu0
    %v1584 = vadd.f32 0.0, %v1583
    %v1585 = vpop.f32.mrb[0].mxu0
    %1586 = vdwg.mxu0
    %v1587 = vadd.f32 %v1498, %v1569
    %v1588 = vadd.f32 %v1499, %v1574
    %v1589 = vadd.f32 %v1500, %v1579
    %v1590 = vadd.f32 %v1501, %v1584
    %v1591 = vtanh.pop %v1587
    %v1592 = vtanh.pop %v1588
    %v1593 = vtanh.pop %v1589
    %v1594 = vtanh.pop %v1590
    %v1595 = vld [vmem:[#allocation2 + $0x28] sm:$0xff]
    %v1596 = vld [vmem:[#allocation2 + $0x68] sm:$0xff]
    %v1597 = vld [vmem:[#allocation2 + $0xa8] sm:$0xff]
    %v1598 = vld [vmem:[#allocation2 + $0xe8] sm:$0xff]
    %1599 = vmatprep.subr.mxu0 0.0
    %1600 = vmatpush1.msra.mxu0 %v1591
    %1601 = vmatprep.subr.mxu0 0.0
    %1602 = vmatpush1.msra.mxu0 %v1592
    %1603 = vmatprep.subr.mxu0 0.0
    %1604 = vmatpush1.msra.mxu0 %v1593
    %1605 = vmatprep.subr.mxu0 0.0
    %1606 = vmatpush1.msra.mxu0 %v1594
    %1607 = vmatprep.subr.mxu0 0.0
    %1608 = vmatpush1.msra.mxu0 0.0
    %1609 = vmatprep.subr.mxu0 0.0
    %1610 = vmatpush1.msra.mxu0 0.0
    %1611 = vmatprep.subr.mxu0 0.0
    %1612 = vmatpush1.msra.mxu0 0.0
    %1613 = vmatprep.subr.mxu0 0.0
    %1614 = vmatpush1.msra.mxu0 0.0
    %1615 = vmatprep.subr.mxu0 0.0
    %1616 = vmatpush1.msra.mxu0 0.0
    %1617 = vmatprep.subr.mxu0 0.0
    %1618 = vmatpush1.msra.mxu0 0.0
    %1619 = vmatprep.subr.mxu0 0.0
    %1620 = vmatpush1.msra.mxu0 0.0
    %1621 = vmatprep.subr.mxu0 0.0
    %1622 = vmatpush1.msra.mxu0 0.0
    %1623 = vmatprep.subr.mxu0 0.0
    %1624 = vmatpush1.msra.mxu0 0.0
    %1625 = vmatprep.subr.mxu0 0.0
    %1626 = vmatpush1.msra.mxu0 0.0
    %1627 = vmatprep.subr.mxu0 0.0
    %1628 = vmatpush1.msra.mxu0 0.0
    %1629 = vmatprep.subr.mxu0 0.0
    %1630 = vmatpush1.msra.mxu0 0.0
    %1631 = vmatprep.subr.mxu0 0.0
    %1632 = vmatpush1.msra.mxu0 0.0
    %1633 = vmatprep.subr.mxu0 0.0
    %1634 = vmatpush1.msra.mxu0 0.0
    %1635 = vmatprep.subr.mxu0 0.0
    %1636 = vmatpush1.msra.mxu0 0.0
    %1637 = vmatprep.subr.mxu0 0.0
    %1638 = vmatpush1.msra.mxu0 0.0
    %1639 = vmatprep.subr.mxu0 0.0
    %1640 = vmatpush1.msra.mxu0 0.0
    %1641 = vmatprep.subr.mxu0 0.0
    %1642 = vmatpush1.msra.mxu0 0.0
    %1643 = vmatprep.subr.mxu0 0.0
    %1644 = vmatpush1.msra.mxu0 0.0
    %1645 = vmatprep.subr.mxu0 0.0
    %1646 = vmatpush1.msra.mxu0 0.0
    %1647 = vmatprep.subr.mxu0 0.0
    %1648 = vmatpush1.msra.mxu0 0.0
    %1649 = vmatprep.subr.mxu0 0.0
    %1650 = vmatpush1.msra.mxu0 0.0
    %1651 = vmatprep.subr.mxu0 0.0
    %1652 = vmatpush1.msra.mxu0 0.0
    %1653 = vmatprep.subr.mxu0 0.0
    %1654 = vmatpush1.msra.mxu0 0.0
    %1655 = vmatprep.subr.mxu0 0.0
    %1656 = vmatpush1.msra.mxu0 0.0
    %1657 = vmatprep.subr.mxu0 0.0
    %1658 = vmatpush1.msra.mxu0 0.0
    %1659 = vmatprep.subr.mxu0 0.0
    %1660 = vmatpush1.msra.mxu0 0.0
    %1661 = vmatprep.subr.mxu0 0.0
    %1662 = vmatpush1.msra.mxu0 0.0
    %1663 = vmatprep.mubr.f32.mxu0 0.0
    %1664 = vmatmul.mubr.f32.gmra.mrb[0].mxu0 %v1103
    %v1665 = vpop.f32.mrb[0].mxu0
    %v1666 = vadd.f32 0.0, %v1665
    %v1667 = vpop.f32.mrb[0].mxu0
    %1668 = vmatprep.mubr.f32.mxu0 0.0
    %1669 = vmatmul.mubr.f32.gmra.mrb[0].mxu0 %v1106
    %v1670 = vpop.f32.mrb[0].mxu0
    %v1671 = vadd.f32 0.0, %v1670
    %v1672 = vpop.f32.mrb[0].mxu0
    %1673 = vmatprep.mubr.f32.mxu0 0.0
    %1674 = vmatmul.mubr.f32.gmra.mrb[0].mxu0 %v1109
    %v1675 = vpop.f32.mrb[0].mxu0
    %v1676 = vadd.f32 0.0, %v1675
    %v1677 = vpop.f32.mrb[0].mxu0
    %1678 = vmatprep.mubr.f32.mxu0 0.0
    %1679 = vmatmul.mubr.f32.gmra.mrb[0].mxu0 %v1112
    %v1680 = vpop.f32.mrb[0].mxu0
    %v1681 = vadd.f32 0.0, %v1680
    %v1682 = vpop.f32.mrb[0].mxu0
    %1683 = vdwg.mxu0
    %v1684 = vadd.f32 %v1595, %v1666
    %v1685 = vadd.f32 %v1596, %v1671
    %v1686 = vadd.f32 %v1597, %v1676
    %v1687 = vadd.f32 %v1598, %v1681
    %v1688 = vtanh.pop %v1684
    %v1689 = vtanh.pop %v1685
    %v1690 = vtanh.pop %v1686
    %v1691 = vtanh.pop %v1687
    %v1692 = vld [vmem:[#allocation2 + $0x30] sm:$0xff]
    %v1693 = vld [vmem:[#allocation2 + $0x70] sm:$0xff]
    %v1694 = vld [vmem:[#allocation2 + $0xb0] sm:$0xff]
    %v1695 = vld [vmem:[#allocation2 + $0xf0] sm:$0xff]
    %1696 = vmatprep.subr.mxu0 0.0
    %1697 = vmatpush1.msra.mxu0 %v1688
    %1698 = vmatprep.subr.mxu0 0.0
    %1699 = vmatpush1.msra.mxu0 %v1689
    %1700 = vmatprep.subr.mxu0 0.0
    %1701 = vmatpush1.msra.mxu0 %v1690
    %1702 = vmatprep.subr.mxu0 0.0
    %1703 = vmatpush1.msra.mxu0 %v1691
    %1704 = vmatprep.subr.mxu0 0.0
    %1705 = vmatpush1.msra.mxu0 0.0
    %1706 = vmatprep.subr.mxu0 0.0
    %1707 = vmatpush1.msra.mxu0 0.0
    %1708 = vmatprep.subr.mxu0 0.0
    %1709 = vmatpush1.msra.mxu0 0.0
    %1710 = vmatprep.subr.mxu0 0.0
    %1711 = vmatpush1.msra.mxu0 0.0
    %1712 = vmatprep.subr.mxu0 0.0
    %1713 = vmatpush1.msra.mxu0 0.0
    %1714 = vmatprep.subr.mxu0 0.0
    %1715 = vmatpush1.msra.mxu0 0.0
    %1716 = vmatprep.subr.mxu0 0.0
    %1717 = vmatpush1.msra.mxu0 0.0
    %1718 = vmatprep.subr.mxu0 0.0
    %1719 = vmatpush1.msra.mxu0 0.0
    %1720 = vmatprep.subr.mxu0 0.0
    %1721 = vmatpush1.msra.mxu0 0.0
    %1722 = vmatprep.subr.mxu0 0.0
    %1723 = vmatpush1.msra.mxu0 0.0
    %1724 = vmatprep.subr.mxu0 0.0
    %1725 = vmatpush1.msra.mxu0 0.0
    %1726 = vmatprep.subr.mxu0 0.0
    %1727 = vmatpush1.msra.mxu0 0.0
    %1728 = vmatprep.subr.mxu0 0.0
    %1729 = vmatpush1.msra.mxu0 0.0
    %1730 = vmatprep.subr.mxu0 0.0
    %1731 = vmatpush1.msra.mxu0 0.0
    %1732 = vmatprep.subr.mxu0 0.0
    %1733 = vmatpush1.msra.mxu0 0.0
    %1734 = vmatprep.subr.mxu0 0.0
    %1735 = vmatpush1.msra.mxu0 0.0
    %1736 = vmatprep.subr.mxu0 0.0
    %1737 = vmatpush1.msra.mxu0 0.0
    %1738 = vmatprep.subr.mxu0 0.0
    %1739 = vmatpush1.msra.mxu0 0.0
    %1740 = vmatprep.subr.mxu0 0.0
    %1741 = vmatpush1.msra.mxu0 0.0
    %1742 = vmatprep.subr.mxu0 0.0
    %1743 = vmatpush1.msra.mxu0 0.0
    %1744 = vmatprep.subr.mxu0 0.0
    %1745 = vmatpush1.msra.mxu0 0.0
    %1746 = vmatprep.subr.mxu0 0.0
    %1747 = vmatpush1.msra.mxu0 0.0
    %1748 = vmatprep.subr.mxu0 0.0
    %1749 = vmatpush1.msra.mxu0 0.0
    %1750 = vmatprep.subr.mxu0 0.0
    %1751 = vmatpush1.msra.mxu0 0.0
    %1752 = vmatprep.subr.mxu0 0.0
    %1753 = vmatpush1.msra.mxu0 0.0
    %1754 = vmatprep.subr.mxu0 0.0
    %1755 = vmatpush1.msra.mxu0 0.0
    %1756 = vmatprep.subr.mxu0 0.0
    %1757 = vmatpush1.msra.mxu0 0.0
    %1758 = vmatprep.subr.mxu0 0.0
    %1759 = vmatpush1.msra.mxu0 0.0
    %1760 = vmatprep.mubr.f32.mxu0 0.0
    %1761 = vmatmul.mubr.f32.gmra.mrb[0].mxu0 %v1103
    %v1762 = vpop.f32.mrb[0].mxu0
    %v1763 = vadd.f32 0.0, %v1762
    %v1764 = vpop.f32.mrb[0].mxu0
    %1765 = vmatprep.mubr.f32.mxu0 0.0
    %1766 = vmatmul.mubr.f32.gmra.mrb[0].mxu0 %v1106
    %v1767 = vpop.f32.mrb[0].mxu0
    %v1768 = vadd.f32 0.0, %v1767
    %v1769 = vpop.f32.mrb[0].mxu0
    %1770 = vmatprep.mubr.f32.mxu0 0.0
    %1771 = vmatmul.mubr.f32.gmra.mrb[0].mxu0 %v1109
    %v1772 = vpop.f32.mrb[0].mxu0
    %v1773 = vadd.f32 0.0, %v1772
    %v1774 = vpop.f32.mrb[0].mxu0
    %1775 = vmatprep.mubr.f32.mxu0 0.0
    %1776 = vmatmul.mubr.f32.gmra.mrb[0].mxu0 %v1112
    %v1777 = vpop.f32.mrb[0].mxu0
    %v1778 = vadd.f32 0.0, %v1777
    %v1779 = vpop.f32.mrb[0].mxu0
    %1780 = vdwg.mxu0
    %v1781 = vadd.f32 %v1692, %v1763
    %v1782 = vadd.f32 %v1693, %v1768
    %v1783 = vadd.f32 %v1694, %v1773
    %v1784 = vadd.f32 %v1695, %v1778
    %v1785 = vtanh.pop %v1781
    %v1786 = vtanh.pop %v1782
    %v1787 = vtanh.pop %v1783
    %v1788 = vtanh.pop %v1784
    %v1789 = vld [vmem:[#allocation2 + $0x38] sm:$0xff]
    %v1790 = vld [vmem:[#allocation2 + $0x78] sm:$0xff]
    %v1791 = vld [vmem:[#allocation2 + $0xb8] sm:$0xff]
    %v1792 = vld [vmem:[#allocation2 + $0xf8] sm:$0xff]
    %1793 = vmatprep.subr.mxu0 0.0
    %1794 = vmatpush1.msra.mxu0 %v1785
    %1795 = vmatprep.subr.mxu0 0.0
    %1796 = vmatpush1.msra.mxu0 %v1786
    %1797 = vmatprep.subr.mxu0 0.0
    %1798 = vmatpush1.msra.mxu0 %v1787
    %1799 = vmatprep.subr.mxu0 0.0
    %1800 = vmatpush1.msra.mxu0 %v1788
    %1801 = vmatprep.subr.mxu0 0.0
    %1802 = vmatpush1.msra.mxu0 0.0
    %1803 = vmatprep.subr.mxu0 0.0
    %1804 = vmatpush1.msra.mxu0 0.0
    %1805 = vmatprep.subr.mxu0 0.0
    %1806 = vmatpush1.msra.mxu0 0.0
    %1807 = vmatprep.subr.mxu0 0.0
    %1808 = vmatpush1.msra.mxu0 0.0
    %1809 = vmatprep.subr.mxu0 0.0
    %1810 = vmatpush1.msra.mxu0 0.0
    %1811 = vmatprep.subr.mxu0 0.0
    %1812 = vmatpush1.msra.mxu0 0.0
    %1813 = vmatprep.subr.mxu0 0.0
    %1814 = vmatpush1.msra.mxu0 0.0
    %1815 = vmatprep.subr.mxu0 0.0
    %1816 = vmatpush1.msra.mxu0 0.0
    %1817 = vmatprep.subr.mxu0 0.0
    %1818 = vmatpush1.msra.mxu0 0.0
    %1819 = vmatprep.subr.mxu0 0.0
    %1820 = vmatpush1.msra.mxu0 0.0
    %1821 = vmatprep.subr.mxu0 0.0
    %1822 = vmatpush1.msra.mxu0 0.0
    %1823 = vmatprep.subr.mxu0 0.0
    %1824 = vmatpush1.msra.mxu0 0.0
    %1825 = vmatprep.subr.mxu0 0.0
    %1826 = vmatpush1.msra.mxu0 0.0
    %1827 = vmatprep.subr.mxu0 0.0
    %1828 = vmatpush1.msra.mxu0 0.0
    %1829 = vmatprep.subr.mxu0 0.0
    %1830 = vmatpush1.msra.mxu0 0.0
    %1831 = vmatprep.subr.mxu0 0.0
    %1832 = vmatpush1.msra.mxu0 0.0
    %1833 = vmatprep.subr.mxu0 0.0
    %1834 = vmatpush1.msra.mxu0 0.0
    %1835 = vmatprep.subr.mxu0 0.0
    %1836 = vmatpush1.msra.mxu0 0.0
    %1837 = vmatprep.subr.mxu0 0.0
    %1838 = vmatpush1.msra.mxu0 0.0
    %1839 = vmatprep.subr.mxu0 0.0
    %1840 = vmatpush1.msra.mxu0 0.0
    %1841 = vmatprep.subr.mxu0 0.0
    %1842 = vmatpush1.msra.mxu0 0.0
    %1843 = vmatprep.subr.mxu0 0.0
    %1844 = vmatpush1.msra.mxu0 0.0
    %1845 = vmatprep.subr.mxu0 0.0
    %1846 = vmatpush1.msra.mxu0 0.0
    %1847 = vmatprep.subr.mxu0 0.0
    %1848 = vmatpush1.msra.mxu0 0.0
    %1849 = vmatprep.subr.mxu0 0.0
    %1850 = vmatpush1.msra.mxu0 0.0
    %1851 = vmatprep.subr.mxu0 0.0
    %1852 = vmatpush1.msra.mxu0 0.0
    %1853 = vmatprep.subr.mxu0 0.0
    %1854 = vmatpush1.msra.mxu0 0.0
    %1855 = vmatprep.subr.mxu0 0.0
    %1856 = vmatpush1.msra.mxu0 0.0
    %1857 = vmatprep.mubr.f32.mxu0 0.0
    %1858 = vmatmul.mubr.f32.gmra.mrb[0].mxu0 %v1103
    %v1859 = vpop.f32.mrb[0].mxu0
    %v1860 = vadd.f32 0.0, %v1859
    %v1861 = vpop.f32.mrb[0].mxu0
    %1862 = vmatprep.mubr.f32.mxu0 0.0
    %1863 = vmatmul.mubr.f32.gmra.mrb[0].mxu0 %v1106
    %v1864 = vpop.f32.mrb[0].mxu0
    %v1865 = vadd.f32 0.0, %v1864
    %v1866 = vpop.f32.mrb[0].mxu0
    %1867 = vmatprep.mubr.f32.mxu0 0.0
    %1868 = vmatmul.mubr.f32.gmra.mrb[0].mxu0 %v1109
    %v1869 = vpop.f32.mrb[0].mxu0
    %v1870 = vadd.f32 0.0, %v1869
    %v1871 = vpop.f32.mrb[0].mxu0
    %1872 = vmatprep.mubr.f32.mxu0 0.0
    %1873 = vmatmul.mubr.f32.gmra.mrb[0].mxu0 %v1112
    %v1874 = vpop.f32.mrb[0].mxu0
    %v1875 = vadd.f32 0.0, %v1874
    %v1876 = vpop.f32.mrb[0].mxu0
    %1877 = vdwg.mxu0
    %v1878 = vadd.f32 %v1789, %v1860
    %v1879 = vadd.f32 %v1790, %v1865
    %v1880 = vadd.f32 %v1791, %v1870
    %v1881 = vadd.f32 %v1792, %v1875
    %v1882 = vtanh.pop %v1878
    %v1883 = vtanh.pop %v1879
    %v1884 = vtanh.pop %v1880
    %v1885 = vtanh.pop %v1881
    %v1886 = vld [vmem:[#allocation3 + $0xe0] sm:$0xff]
    %v1887 = vld [vmem:[#allocation3 + $0xe8] sm:$0xff]
    %v1888 = vld [vmem:[#allocation3 + $0xf0] sm:$0xff]
    %v1889 = vld [vmem:[#allocation3 + $0xf8] sm:$0xff]
    %v1890 = vld [vmem:[#allocation3 + $0x100] sm:$0xff]
    %v1891 = vld [vmem:[#allocation3 + $0x108] sm:$0xff]
    %v1892 = vld [vmem:[#allocation3 + $0x110] sm:$0xff]
    %v1893 = vld [vmem:[#allocation3 + $0x118] sm:$0xff]
    %v1894 = vld [vmem:[#allocation3 + $0x120] sm:$0xff]
    %v1895 = vld [vmem:[#allocation3 + $0x128] sm:$0xff]
    %v1896 = vld [vmem:[#allocation3 + $0x130] sm:$0xff]
    %v1897 = vld [vmem:[#allocation3 + $0x138] sm:$0xff]
    %v1898 = vld [vmem:[#allocation3 + $0x140] sm:$0xff]
    %v1899 = vld [vmem:[#allocation3 + $0x148] sm:$0xff]
    %v1900 = vld [vmem:[#allocation3 + $0x150] sm:$0xff]
    %v1901 = vld [vmem:[#allocation3 + $0x158] sm:$0xff]
    %v1903 = vsel %vm1101, %v1894, 0
    %v1906 = vsel %vm1101, %v1895, 0
    %v1909 = vsel %vm1101, %v1896, 0
    %v1912 = vsel %vm1101, %v1897, 0
    %v1915 = vsel %vm1101, %v1898, 0
    %v1918 = vsel %vm1101, %v1899, 0
    %v1921 = vsel %vm1101, %v1900, 0
    %v1924 = vsel %vm1101, %v1901, 0
    %1926 = vmatprep.subr.mxu0 0.0
    %1927 = vmatpush1.msra.mxu0 %v1882
    %1928 = vmatprep.subr.mxu0 0.0
    %1929 = vmatpush1.msra.mxu0 %v1883
    %1930 = vmatprep.subr.mxu0 0.0
    %1931 = vmatpush1.msra.mxu0 %v1884
    %1932 = vmatprep.subr.mxu0 0.0
    %1933 = vmatpush1.msra.mxu0 %v1885
    %1934 = vmatprep.subr.mxu0 0.0
    %1935 = vmatpush1.msra.mxu0 0.0
    %1936 = vmatprep.subr.mxu0 0.0
    %1937 = vmatpush1.msra.mxu0 0.0
    %1938 = vmatprep.subr.mxu0 0.0
    %1939 = vmatpush1.msra.mxu0 0.0
    %1940 = vmatprep.subr.mxu0 0.0
    %1941 = vmatpush1.msra.mxu0 0.0
    %1942 = vmatprep.subr.mxu0 0.0
    %1943 = vmatpush1.msra.mxu0 0.0
    %1944 = vmatprep.subr.mxu0 0.0
    %1945 = vmatpush1.msra.mxu0 0.0
    %1946 = vmatprep.subr.mxu0 0.0
    %1947 = vmatpush1.msra.mxu0 0.0
    %1948 = vmatprep.subr.mxu0 0.0
    %1949 = vmatpush1.msra.mxu0 0.0
    %1950 = vmatprep.subr.mxu0 0.0
    %1951 = vmatpush1.msra.mxu0 0.0
    %1952 = vmatprep.subr.mxu0 0.0
    %1953 = vmatpush1.msra.mxu0 0.0
    %1954 = vmatprep.subr.mxu0 0.0
    %1955 = vmatpush1.msra.mxu0 0.0
    %1956 = vmatprep.subr.mxu0 0.0
    %1957 = vmatpush1.msra.mxu0 0.0
    %1958 = vmatprep.subr.mxu0 0.0
    %1959 = vmatpush1.msra.mxu0 0.0
    %1960 = vmatprep.subr.mxu0 0.0
    %1961 = vmatpush1.msra.mxu0 0.0
    %1962 = vmatprep.subr.mxu0 0.0
    %1963 = vmatpush1.msra.mxu0 0.0
    %1964 = vmatprep.subr.mxu0 0.0
    %1965 = vmatpush1.msra.mxu0 0.0
    %1966 = vmatprep.subr.mxu0 0.0
    %1967 = vmatpush1.msra.mxu0 0.0
    %1968 = vmatprep.subr.mxu0 0.0
    %1969 = vmatpush1.msra.mxu0 0.0
    %1970 = vmatprep.subr.mxu0 0.0
    %1971 = vmatpush1.msra.mxu0 0.0
    %1972 = vmatprep.subr.mxu0 0.0
    %1973 = vmatpush1.msra.mxu0 0.0
    %1974 = vmatprep.subr.mxu0 0.0
    %1975 = vmatpush1.msra.mxu0 0.0
    %1976 = vmatprep.subr.mxu0 0.0
    %1977 = vmatpush1.msra.mxu0 0.0
    %1978 = vmatprep.subr.mxu0 0.0
    %1979 = vmatpush1.msra.mxu0 0.0
    %1980 = vmatprep.subr.mxu0 0.0
    %1981 = vmatpush1.msra.mxu0 0.0
    %1982 = vmatprep.subr.mxu0 0.0
    %1983 = vmatpush1.msra.mxu0 0.0
    %1984 = vmatprep.subr.mxu0 0.0
    %1985 = vmatpush1.msra.mxu0 0.0
    %1986 = vmatprep.subr.mxu0 0.0
    %1987 = vmatpush1.msra.mxu0 0.0
    %1988 = vmatprep.subr.mxu0 0.0
    %1989 = vmatpush1.msra.mxu0 0.0
    %1990 = vmatprep.mubr.f32.mxu0 0.0
    %1991 = vmatmul.mubr.f32.gmra.mrb[0].mxu0 %v1903
    %v1992 = vpop.f32.mrb[0].mxu0
    %v1993 = vadd.f32 0.0, %v1992
    %v1994 = vpop.f32.mrb[0].mxu0
    %1995 = vmatprep.mubr.f32.mxu0 0.0
    %1996 = vmatmul.mubr.f32.gmra.mrb[0].mxu0 %v1906
    %v1997 = vpop.f32.mrb[0].mxu0
    %v1998 = vadd.f32 0.0, %v1997
    %v1999 = vpop.f32.mrb[0].mxu0
    %2000 = vmatprep.mubr.f32.mxu0 0.0
    %2001 = vmatmul.mubr.f32.gmra.mrb[0].mxu0 %v1909
    %v2002 = vpop.f32.mrb[0].mxu0
    %v2003 = vadd.f32 0.0, %v2002
    %v2004 = vpop.f32.mrb[0].mxu0
    %2005 = vmatprep.mubr.f32.mxu0 0.0
    %2006 = vmatmul.mubr.f32.gmra.mrb[0].mxu0 %v1912
    %v2007 = vpop.f32.mrb[0].mxu0
    %v2008 = vadd.f32 0.0, %v2007
    %v2009 = vpop.f32.mrb[0].mxu0
    %2010 = vmatprep.mubr.f32.mxu0 0.0
    %2011 = vmatmul.mubr.f32.gmra.mrb[0].mxu0 %v1915
    %v2012 = vpop.f32.mrb[0].mxu0
    %v2013 = vadd.f32 0.0, %v2012
    %v2014 = vpop.f32.mrb[0].mxu0
    %2015 = vmatprep.mubr.f32.mxu0 0.0
    %2016 = vmatmul.mubr.f32.gmra.mrb[0].mxu0 %v1918
    %v2017 = vpop.f32.mrb[0].mxu0
    %v2018 = vadd.f32 0.0, %v2017
    %v2019 = vpop.f32.mrb[0].mxu0
    %2020 = vmatprep.mubr.f32.mxu0 0.0
    %2021 = vmatmul.mubr.f32.gmra.mrb[0].mxu0 %v1921
    %v2022 = vpop.f32.mrb[0].mxu0
    %v2023 = vadd.f32 0.0, %v2022
    %v2024 = vpop.f32.mrb[0].mxu0
    %2025 = vmatprep.mubr.f32.mxu0 0.0
    %2026 = vmatmul.mubr.f32.gmra.mrb[0].mxu0 %v1924
    %v2027 = vpop.f32.mrb[0].mxu0
    %v2028 = vadd.f32 0.0, %v2027
    %v2029 = vpop.f32.mrb[0].mxu0
    %2030 = vdwg.mxu0
    %vm2031 = vcmask 48128
    %v2033 = vsel %vm2031, %v1886, 0
    %v2036 = vsel %vm2031, %v1887, 0
    %v2039 = vsel %vm2031, %v1888, 0
    %v2042 = vsel %vm2031, %v1889, 0
    %v2045 = vsel %vm2031, %v1890, 0
    %v2048 = vsel %vm2031, %v1891, 0
    %v2051 = vsel %vm2031, %v1892, 0
    %v2054 = vsel %vm2031, %v1893, 0
    %vm2056 = vcmask 1045504
    %v2058 = vsel %vm2056, %v26, 0
    %2060 = vmatprep.subr.mxu0 0.0
    %2061 = vmatpush1.msra.mxu0 %v2058
    %2062 = vmatprep.subr.mxu0 0.0
    %2063 = vmatpush1.msra.mxu0 0.0
    %2064 = vmatprep.subr.mxu0 0.0
    %2065 = vmatpush1.msra.mxu0 0.0
    %2066 = vmatprep.subr.mxu0 0.0
    %2067 = vmatpush1.msra.mxu0 0.0
    %2068 = vmatprep.subr.mxu0 0.0
    %2069 = vmatpush1.msra.mxu0 0.0
    %2070 = vmatprep.subr.mxu0 0.0
    %2071 = vmatpush1.msra.mxu0 0.0
    %2072 = vmatprep.subr.mxu0 0.0
    %2073 = vmatpush1.msra.mxu0 0.0
    %2074 = vmatprep.subr.mxu0 0.0
    %2075 = vmatpush1.msra.mxu0 0.0
    %2076 = vmatprep.subr.mxu0 0.0
    %2077 = vmatpush1.msra.mxu0 0.0
    %2078 = vmatprep.subr.mxu0 0.0
    %2079 = vmatpush1.msra.mxu0 0.0
    %2080 = vmatprep.subr.mxu0 0.0
    %2081 = vmatpush1.msra.mxu0 0.0
    %2082 = vmatprep.subr.mxu0 0.0
    %2083 = vmatpush1.msra.mxu0 0.0
    %2084 = vmatprep.subr.mxu0 0.0
    %2085 = vmatpush1.msra.mxu0 0.0
    %2086 = vmatprep.subr.mxu0 0.0
    %2087 = vmatpush1.msra.mxu0 0.0
    %2088 = vmatprep.subr.mxu0 0.0
    %2089 = vmatpush1.msra.mxu0 0.0
    %2090 = vmatprep.subr.mxu0 0.0
    %2091 = vmatpush1.msra.mxu0 0.0
    %2092 = vmatprep.subr.mxu0 0.0
    %2093 = vmatpush1.msra.mxu0 0.0
    %2094 = vmatprep.subr.mxu0 0.0
    %2095 = vmatpush1.msra.mxu0 0.0
    %2096 = vmatprep.subr.mxu0 0.0
    %2097 = vmatpush1.msra.mxu0 0.0
    %2098 = vmatprep.subr.mxu0 0.0
    %2099 = vmatpush1.msra.mxu0 0.0
    %2100 = vmatprep.subr.mxu0 0.0
    %2101 = vmatpush1.msra.mxu0 0.0
    %2102 = vmatprep.subr.mxu0 0.0
    %2103 = vmatpush1.msra.mxu0 0.0
    %2104 = vmatprep.subr.mxu0 0.0
    %2105 = vmatpush1.msra.mxu0 0.0
    %2106 = vmatprep.subr.mxu0 0.0
    %2107 = vmatpush1.msra.mxu0 0.0
    %2108 = vmatprep.subr.mxu0 0.0
    %2109 = vmatpush1.msra.mxu0 0.0
    %2110 = vmatprep.subr.mxu0 0.0
    %2111 = vmatpush1.msra.mxu0 0.0
    %2112 = vmatprep.subr.mxu0 0.0
    %2113 = vmatpush1.msra.mxu0 0.0
    %2114 = vmatprep.subr.mxu0 0.0
    %2115 = vmatpush1.msra.mxu0 0.0
    %2116 = vmatprep.subr.mxu0 0.0
    %2117 = vmatpush1.msra.mxu0 0.0
    %2118 = vmatprep.subr.mxu0 0.0
    %2119 = vmatpush1.msra.mxu0 0.0
    %2120 = vmatprep.subr.mxu0 0.0
    %2121 = vmatpush1.msra.mxu0 0.0
    %2122 = vmatprep.subr.mxu0 0.0
    %2123 = vmatpush1.msra.mxu0 0.0
    %2124 = vmatprep.mubr.f32.mxu0 0.0
    %2125 = vmatmul.mubr.f32.gmra.mrb[0].mxu0 %v2033
    %v2126 = vpop.f32.mrb[0].mxu0
    %v2127 = vadd.f32 %v1993, %v2126
    %v2128 = vpop.f32.mrb[0].mxu0
    %2129 = vmatprep.mubr.f32.mxu0 0.0
    %2130 = vmatmul.mubr.f32.gmra.mrb[0].mxu0 %v2036
    %v2131 = vpop.f32.mrb[0].mxu0
    %v2132 = vadd.f32 %v1998, %v2131
    %v2133 = vpop.f32.mrb[0].mxu0
    %2134 = vmatprep.mubr.f32.mxu0 0.0
    %2135 = vmatmul.mubr.f32.gmra.mrb[0].mxu0 %v2039
    %v2136 = vpop.f32.mrb[0].mxu0
    %v2137 = vadd.f32 %v2003, %v2136
    %v2138 = vpop.f32.mrb[0].mxu0
    %2139 = vmatprep.mubr.f32.mxu0 0.0
    %2140 = vmatmul.mubr.f32.gmra.mrb[0].mxu0 %v2042
    %v2141 = vpop.f32.mrb[0].mxu0
    %v2142 = vadd.f32 %v2008, %v2141
    %v2143 = vpop.f32.mrb[0].mxu0
    %2144 = vmatprep.mubr.f32.mxu0 0.0
    %2145 = vmatmul.mubr.f32.gmra.mrb[0].mxu0 %v2045
    %v2146 = vpop.f32.mrb[0].mxu0
    %v2147 = vadd.f32 %v2013, %v2146
    %v2148 = vpop.f32.mrb[0].mxu0
    %2149 = vmatprep.mubr.f32.mxu0 0.0
    %2150 = vmatmul.mubr.f32.gmra.mrb[0].mxu0 %v2048
    %v2151 = vpop.f32.mrb[0].mxu0
    %v2152 = vadd.f32 %v2018, %v2151
    %v2153 = vpop.f32.mrb[0].mxu0
    %2154 = vmatprep.mubr.f32.mxu0 0.0
    %2155 = vmatmul.mubr.f32.gmra.mrb[0].mxu0 %v2051
    %v2156 = vpop.f32.mrb[0].mxu0
    %v2157 = vadd.f32 %v2023, %v2156
    %v2158 = vpop.f32.mrb[0].mxu0
    %2159 = vmatprep.mubr.f32.mxu0 0.0
    %2160 = vmatmul.mubr.f32.gmra.mrb[0].mxu0 %v2054
    %v2161 = vpop.f32.mrb[0].mxu0
    %v2162 = vadd.f32 %v2028, %v2161
    %v2163 = vpop.f32.mrb[0].mxu0
    %2164 = vdwg.mxu0
    %v2165 = vld [vmem:[#allocation3 + $0x160] sm:$0xff]
    %v2166 = vld [vmem:[#allocation3 + $0x168] sm:$0xff]
    %v2167 = vld [vmem:[#allocation3 + $0x170] sm:$0xff]
    %v2168 = vld [vmem:[#allocation3 + $0x178] sm:$0xff]
    %v2169 = vld [vmem:[#allocation3 + $0x180] sm:$0xff]
    %v2170 = vld [vmem:[#allocation3 + $0x188] sm:$0xff]
    %v2171 = vld [vmem:[#allocation3 + $0x190] sm:$0xff]
    %v2172 = vld [vmem:[#allocation3 + $0x198] sm:$0xff]
    %2174 = vset.pattern.permute.xlu0 0
    %2175 = vperm.xlu0 %2174, %v2165
    %v2176 = vpop.permute.xlu0 %2175
    %2179 = vset.pattern.permute.xlu0 0
    %2180 = vperm.xlu0 %2179, %v2166
    %v2181 = vpop.permute.xlu0 %2180
    %2184 = vset.pattern.permute.xlu0 0
    %2185 = vperm.xlu0 %2184, %v2167
    %v2186 = vpop.permute.xlu0 %2185
    %2189 = vset.pattern.permute.xlu0 0
    %2190 = vperm.xlu0 %2189, %v2168
    %v2191 = vpop.permute.xlu0 %2190
    %2194 = vset.pattern.permute.xlu0 0
    %2195 = vperm.xlu0 %2194, %v2169
    %v2196 = vpop.permute.xlu0 %2195
    %2199 = vset.pattern.permute.xlu0 0
    %2200 = vperm.xlu0 %2199, %v2170
    %v2201 = vpop.permute.xlu0 %2200
    %2204 = vset.pattern.permute.xlu0 0
    %2205 = vperm.xlu0 %2204, %v2171
    %v2206 = vpop.permute.xlu0 %2205
    %2209 = vset.pattern.permute.xlu0 0
    %2210 = vperm.xlu0 %2209, %v2172
    %v2211 = vpop.permute.xlu0 %2210
    %v2213 = vadd.f32 %v2127, %v2176
    %v2214 = vadd.f32 %v2132, %v2181
    %v2215 = vadd.f32 %v2137, %v2186
    %v2216 = vadd.f32 %v2142, %v2191
    %v2217 = vadd.f32 %v2147, %v2196
    %v2218 = vadd.f32 %v2152, %v2201
    %v2219 = vadd.f32 %v2157, %v2206
    %v2220 = vadd.f32 %v2162, %v2211
    %v2221 = vmax.f32 %v2213, 0.0
    %v2222 = vmax.f32 %v2214, 0.0
    %v2223 = vmax.f32 %v2215, 0.0
    %v2224 = vmax.f32 %v2216, 0.0
    %v2225 = vmax.f32 %v2217, 0.0
    %v2226 = vmax.f32 %v2218, 0.0
    %v2227 = vmax.f32 %v2219, 0.0
    %v2228 = vmax.f32 %v2220, 0.0
    %v2229 = vld [vmem:[#allocation3 + $0x1a0] sm:$0xff]
    %v2230 = vld [vmem:[#allocation3 + $0x1a8] sm:$0xff]
    %v2231 = vld [vmem:[#allocation3 + $0x1b0] sm:$0xff]
    %v2232 = vld [vmem:[#allocation3 + $0x1b8] sm:$0xff]
    %v2233 = vld [vmem:[#allocation3 + $0x1c0] sm:$0xff]
    %v2234 = vld [vmem:[#allocation3 + $0x1c8] sm:$0xff]
    %v2235 = vld [vmem:[#allocation3 + $0x1d0] sm:$0xff]
    %v2236 = vld [vmem:[#allocation3 + $0x1d8] sm:$0xff]
    %2238 = vset.pattern.permute.xlu0 0
    %2239 = vperm.xlu0 %2238, %v2233
    %v2240 = vpop.permute.xlu0 %2239
    %2243 = vset.pattern.permute.xlu0 0
    %2244 = vperm.xlu0 %2243, %v2234
    %v2245 = vpop.permute.xlu0 %2244
    %2248 = vset.pattern.permute.xlu0 0
    %2249 = vperm.xlu0 %2248, %v2235
    %v2250 = vpop.permute.xlu0 %2249
    %2253 = vset.pattern.permute.xlu0 0
    %2254 = vperm.xlu0 %2253, %v2236
    %v2255 = vpop.permute.xlu0 %2254
    %v2258 = vsel %vm692, %v2229, 0
    %v2261 = vsel %vm692, %v2230, 0
    %v2264 = vsel %vm692, %v2231, 0
    %v2267 = vsel %vm692, %v2232, 0
    %2269 = vmatprep.subr.mxu0 0.0
    %2270 = vmatpush1.msra.mxu0 %v2221
    %2271 = vmatprep.subr.mxu0 0.0
    %2272 = vmatpush1.msra.mxu0 %v2222
    %2273 = vmatprep.subr.mxu0 0.0
    %2274 = vmatpush1.msra.mxu0 %v2223
    %2275 = vmatprep.subr.mxu0 0.0
    %2276 = vmatpush1.msra.mxu0 %v2224
    %2277 = vmatprep.subr.mxu0 0.0
    %2278 = vmatpush1.msra.mxu0 %v2225
    %2279 = vmatprep.subr.mxu0 0.0
    %2280 = vmatpush1.msra.mxu0 %v2226
    %2281 = vmatprep.subr.mxu0 0.0
    %2282 = vmatpush1.msra.mxu0 %v2227
    %2283 = vmatprep.subr.mxu0 0.0
    %2284 = vmatpush1.msra.mxu0 %v2228
    %2285 = vmatprep.subr.mxu0 0.0
    %2286 = vmatpush1.msra.mxu0 0.0
    %2287 = vmatprep.subr.mxu0 0.0
    %2288 = vmatpush1.msra.mxu0 0.0
    %2289 = vmatprep.subr.mxu0 0.0
    %2290 = vmatpush1.msra.mxu0 0.0
    %2291 = vmatprep.subr.mxu0 0.0
    %2292 = vmatpush1.msra.mxu0 0.0
    %2293 = vmatprep.subr.mxu0 0.0
    %2294 = vmatpush1.msra.mxu0 0.0
    %2295 = vmatprep.subr.mxu0 0.0
    %2296 = vmatpush1.msra.mxu0 0.0
    %2297 = vmatprep.subr.mxu0 0.0
    %2298 = vmatpush1.msra.mxu0 0.0
    %2299 = vmatprep.subr.mxu0 0.0
    %2300 = vmatpush1.msra.mxu0 0.0
    %2301 = vmatprep.subr.mxu0 0.0
    %2302 = vmatpush1.msra.mxu0 0.0
    %2303 = vmatprep.subr.mxu0 0.0
    %2304 = vmatpush1.msra.mxu0 0.0
    %2305 = vmatprep.subr.mxu0 0.0
    %2306 = vmatpush1.msra.mxu0 0.0
    %2307 = vmatprep.subr.mxu0 0.0
    %2308 = vmatpush1.msra.mxu0 0.0
    %2309 = vmatprep.subr.mxu0 0.0
    %2310 = vmatpush1.msra.mxu0 0.0
    %2311 = vmatprep.subr.mxu0 0.0
    %2312 = vmatpush1.msra.mxu0 0.0
    %2313 = vmatprep.subr.mxu0 0.0
    %2314 = vmatpush1.msra.mxu0 0.0
    %2315 = vmatprep.subr.mxu0 0.0
    %2316 = vmatpush1.msra.mxu0 0.0
    %2317 = vmatprep.subr.mxu0 0.0
    %2318 = vmatpush1.msra.mxu0 0.0
    %2319 = vmatprep.subr.mxu0 0.0
    %2320 = vmatpush1.msra.mxu0 0.0
    %2321 = vmatprep.subr.mxu0 0.0
    %2322 = vmatpush1.msra.mxu0 0.0
    %2323 = vmatprep.subr.mxu0 0.0
    %2324 = vmatpush1.msra.mxu0 0.0
    %2325 = vmatprep.subr.mxu0 0.0
    %2326 = vmatpush1.msra.mxu0 0.0
    %2327 = vmatprep.subr.mxu0 0.0
    %2328 = vmatpush1.msra.mxu0 0.0
    %2329 = vmatprep.subr.mxu0 0.0
    %2330 = vmatpush1.msra.mxu0 0.0
    %2331 = vmatprep.subr.mxu0 0.0
    %2332 = vmatpush1.msra.mxu0 0.0
    %2333 = vmatprep.mubr.f32.mxu0 0.0
    %2334 = vmatmul.mubr.f32.gmra.mrb[0].mxu0 %v2258
    %v2335 = vpop.f32.mrb[0].mxu0
    %v2336 = vadd.f32 %v2240, %v2335
    %v2337 = vpop.f32.mrb[0].mxu0
    %2338 = vmatprep.mubr.f32.mxu0 0.0
    %2339 = vmatmul.mubr.f32.gmra.mrb[0].mxu0 %v2261
    %v2340 = vpop.f32.mrb[0].mxu0
    %v2341 = vadd.f32 %v2245, %v2340
    %v2342 = vpop.f32.mrb[0].mxu0
    %2343 = vmatprep.mubr.f32.mxu0 0.0
    %2344 = vmatmul.mubr.f32.gmra.mrb[0].mxu0 %v2264
    %v2345 = vpop.f32.mrb[0].mxu0
    %v2346 = vadd.f32 %v2250, %v2345
    %v2347 = vpop.f32.mrb[0].mxu0
    %2348 = vmatprep.mubr.f32.mxu0 0.0
    %2349 = vmatmul.mubr.f32.gmra.mrb[0].mxu0 %v2267
    %v2350 = vpop.f32.mrb[0].mxu0
    %v2351 = vadd.f32 %v2255, %v2350
    %v2352 = vpop.f32.mrb[0].mxu0
    %2353 = vdwg.mxu0
    %v2354 = vmax.f32 %v2336, 0.0
    %v2355 = vmax.f32 %v2341, 0.0
    %v2356 = vmax.f32 %v2346, 0.0
    %v2357 = vmax.f32 %v2351, 0.0
    %v2358 = vld [vmem:[#allocation3 + $0x1e0] sm:$0x1]
    %v2359 = vld [vmem:[#allocation3 + $0x1e8] sm:$0x1]
    %2361 = vset.pattern.permute.xlu0 0
    %2362 = vperm.xlu0 %2361, %v2359
    %v2363 = vpop.permute.xlu0 %2362
    %v2366 = vsel %vm1101, %v2358, 0
    %2368 = vmatprep.subr.mxu0 0.0
    %2369 = vmatpush1.msra.mxu0 %v2354
    %2370 = vmatprep.subr.mxu0 0.0
    %2371 = vmatpush1.msra.mxu0 %v2355
    %2372 = vmatprep.subr.mxu0 0.0
    %2373 = vmatpush1.msra.mxu0 %v2356
    %2374 = vmatprep.subr.mxu0 0.0
    %2375 = vmatpush1.msra.mxu0 %v2357
    %2376 = vmatprep.subr.mxu0 0.0
    %2377 = vmatpush1.msra.mxu0 0.0
    %2378 = vmatprep.subr.mxu0 0.0
    %2379 = vmatpush1.msra.mxu0 0.0
    %2380 = vmatprep.subr.mxu0 0.0
    %2381 = vmatpush1.msra.mxu0 0.0
    %2382 = vmatprep.subr.mxu0 0.0
    %2383 = vmatpush1.msra.mxu0 0.0
    %2384 = vmatprep.subr.mxu0 0.0
    %2385 = vmatpush1.msra.mxu0 0.0
    %2386 = vmatprep.subr.mxu0 0.0
    %2387 = vmatpush1.msra.mxu0 0.0
    %2388 = vmatprep.subr.mxu0 0.0
    %2389 = vmatpush1.msra.mxu0 0.0
    %2390 = vmatprep.subr.mxu0 0.0
    %2391 = vmatpush1.msra.mxu0 0.0
    %2392 = vmatprep.subr.mxu0 0.0
    %2393 = vmatpush1.msra.mxu0 0.0
    %2394 = vmatprep.subr.mxu0 0.0
    %2395 = vmatpush1.msra.mxu0 0.0
    %2396 = vmatprep.subr.mxu0 0.0
    %2397 = vmatpush1.msra.mxu0 0.0
    %2398 = vmatprep.subr.mxu0 0.0
    %2399 = vmatpush1.msra.mxu0 0.0
    %2400 = vmatprep.subr.mxu0 0.0
    %2401 = vmatpush1.msra.mxu0 0.0
    %2402 = vmatprep.subr.mxu0 0.0
    %2403 = vmatpush1.msra.mxu0 0.0
    %2404 = vmatprep.subr.mxu0 0.0
    %2405 = vmatpush1.msra.mxu0 0.0
    %2406 = vmatprep.subr.mxu0 0.0
    %2407 = vmatpush1.msra.mxu0 0.0
    %2408 = vmatprep.subr.mxu0 0.0
    %2409 = vmatpush1.msra.mxu0 0.0
    %2410 = vmatprep.subr.mxu0 0.0
    %2411 = vmatpush1.msra.mxu0 0.0
    %2412 = vmatprep.subr.mxu0 0.0
    %2413 = vmatpush1.msra.mxu0 0.0
    %2414 = vmatprep.subr.mxu0 0.0
    %2415 = vmatpush1.msra.mxu0 0.0
    %2416 = vmatprep.subr.mxu0 0.0
    %2417 = vmatpush1.msra.mxu0 0.0
    %2418 = vmatprep.subr.mxu0 0.0
    %2419 = vmatpush1.msra.mxu0 0.0
    %2420 = vmatprep.subr.mxu0 0.0
    %2421 = vmatpush1.msra.mxu0 0.0
    %2422 = vmatprep.subr.mxu0 0.0
    %2423 = vmatpush1.msra.mxu0 0.0
    %2424 = vmatprep.subr.mxu0 0.0
    %2425 = vmatpush1.msra.mxu0 0.0
    %2426 = vmatprep.subr.mxu0 0.0
    %2427 = vmatpush1.msra.mxu0 0.0
    %2428 = vmatprep.subr.mxu0 0.0
    %2429 = vmatpush1.msra.mxu0 0.0
    %2430 = vmatprep.subr.mxu0 0.0
    %2431 = vmatpush1.msra.mxu0 0.0
    %2432 = vmatprep.mubr.f32.mxu0 0.0
    %2433 = vmatmul.mubr.f32.gmra.mrb[0].mxu0 %v2366
    %v2434 = vpop.f32.mrb[0].mxu0
    %v2435 = vadd.f32 %v2363, %v2434
    %v2436 = vpop.f32.mrb[0].mxu0
    %2437 = vdwg.mxu0
    %2438 = vst [vmem:[#allocation6] sm:$0x1] %v2435
    // Predicated region
    $region14: #{tpu_custom_call.1} parent=1 // pred_check
      _
    $region15: #{tpu_custom_call.1} parent=1 // pred_check_branch
      %2440 = sbr.rel (0) target = $region17
    $region16: #{tpu_custom_call.1} parent=1 // pred_region
      %s2442 = ssub.s32 16, 16
      %2443 = vsyncadd [#allocation5], %s2442
      %s2445 = sshll.u32 [#allocation6], 4
      %s2446 = int_to_ptr.vmem [resolvable:$true] %s2445
      %2448 = dma.vmem_to_hbm [thread:$0]  %s2446, 16, %s2, [#allocation5]
    $region17: #{tpu_custom_call.1} parent=1 // pred_fallthru
      _
    // Predicated region
    $region18: #{tpu_custom_call.1} parent=1 // pred_check
      _
    $region19: #{tpu_custom_call.1} parent=1 // pred_check_branch
      %2450 = sbr.rel (0) target = $region21
    $region20: #{tpu_custom_call.1} parent=1 // pred_region
      %2451 = dma.done [#allocation5], 16
    $region21: #{tpu_custom_call.1} parent=1 // pred_fallthru
      _
    %2452 = vsyncpa [#allocation4], 1
    %2453 = vsyncpa [#allocation5], 1

</llo_original>
